<compile_context>
chip_gen: v6e
topology: v6e:2x2x1
jax: 0.10.0
libtpu: 0.0.40
codegen_flags: <defaults>
</compile_context>

<pallas_src>
import functools
import math

import jax
import jax.numpy as jnp
from jax.experimental import pallas as pl
from jax.experimental.pallas import tpu as pltpu

EPS = 1e-5
NUM_CLUSTERS = 3


def uan_kernel(x_ref, at_ref, bt_ref, s1_ref, s2_ref, c_ref, sl_ref,
               w_ref, b_ref, o_ref, *, num_clusters, pack):
    """One packed batch tile: log-probs (MXU) -> softmax -> mixture (MXU) -> affine."""
    hp = jax.lax.Precision.HIGHEST
    x = x_ref[...].astype(jnp.float32)            # (TB, r*F)
    x2 = x * x

    # ---- per-cluster log probabilities via two MXU contractions -------------
    #   log_probs[b, k] = sum_f x^2*(-iv) + sum_f x*(2*mu*iv) + c_k
    lp = (jnp.dot(x2, at_ref[...], preferred_element_type=jnp.float32, precision=hp)
          + jnp.dot(x, bt_ref[...], preferred_element_type=jnp.float32, precision=hp)
          + c_ref[...])                           # (TB, r*K)

    # ---- softmax over the K clusters of each packed batch element -----------
    K = num_clusters
    cols = []
    for p in range(pack):                         # pack is small & static
        g = lp[:, p * K:(p + 1) * K]              # (TB, K)
        m = jnp.max(g, axis=-1, keepdims=True)
        e = jnp.exp(g - m)
        s = jnp.sum(e, axis=-1, keepdims=True)
        cols.append(e * pl.reciprocal(s, approx=True))
    post = cols[0] if pack == 1 else jnp.concatenate(cols, axis=-1)   # (TB, r*K)

    pw = post * sl_ref[...]                       # posterior * sqrt(lambda)

    # ---- mixture of per-cluster normalizations via MXU -----------------------
    #   x_norm = x * (pw @ inv_sig) - (pw @ mu*inv_sig)
    scale = jnp.dot(pw, s1_ref[...], preferred_element_type=jnp.float32, precision=hp)
    shift = jnp.dot(pw, s2_ref[...], preferred_element_type=jnp.float32, precision=hp)

    y = w_ref[...] * (x * scale - shift) + b_ref[...]
    o_ref[...] = y.astype(o_ref.dtype)


def uan_forward(x, mu_k, sigma_k, lambda_k, weight, bias, *, eps=EPS,
                max_rows_per_tile=1024, vmem_tile_budget=2 * 1024 * 1024):
    B, F = x.shape
    K = mu_k.shape[0]
    out_dtype = x.dtype
    f32 = jnp.float32
    mu_k = mu_k.astype(f32)
    sigma_k = sigma_k.astype(f32)
    lambda_k = lambda_k.reshape(-1).astype(f32)
    weight = weight.reshape(-1).astype(f32)
    bias = bias.reshape(-1).astype(f32)

    # ---- parameter-only precomputation (hoisted out of the kernel) ----------
    iv = 1.0 / (2.0 * sigma_k * sigma_k + eps)              # (K, F)
    A = -iv                                                 # x^2 coefficient
    Bm = 2.0 * mu_k * iv                                    # x coefficient
    # Keep exact PyTorch semantics: log(prod(sigma) + eps).
    # TODO(synk): true Gaussian log-det would be sum_f log(sigma) (prod underflows
    # for large F); kept as-is to match the reference module.
    log_det = jnp.log(jnp.prod(sigma_k, axis=-1) + eps)     # (K,)
    log_lam = jnp.log(lambda_k + eps)                       # (K,)
    c = -jnp.sum(mu_k * mu_k * iv, axis=-1) - log_det + log_lam   # (K,)
    inv_sig = 1.0 / (sigma_k + eps)                         # (K, F)
    S1 = inv_sig
    S2 = mu_k * inv_sig
    sqrt_lam = jnp.sqrt(lambda_k)                           # (K,)

    # ---- lane packing: view x as (B/r, r*F) with r*F a multiple of 128 ------
    if F % 128 == 0:
        r = 1
    else:
        r = 128 // math.gcd(F, 128)
        if r > 16:            # would over-pad batch; fall back to masked lanes
            r = 1
    Fp = r * F
    rK = r * K

    def bd(M):                # (K, F) -> block-diagonal (r*K, r*F)
        return M if r == 1 else jnp.kron(jnp.eye(r, dtype=M.dtype), M)

    A_t = bd(A).T                                # (r*F, r*K)
    Bm_t = bd(Bm).T                              # (r*F, r*K)
    S1_bd = bd(S1)                               # (r*K, r*F)
    S2_bd = bd(S2)                               # (r*K, r*F)
    c_p = jnp.tile(c, r)[None, :]                # (1, r*K)
    sl_p = jnp.tile(sqrt_lam, r)[None, :]        # (1, r*K)
    w_p = jnp.tile(weight, r)[None, :]           # (1, r*F)
    b_p = jnp.tile(bias, r)[None, :]             # (1, r*F)

    # ---- batch tiling: big tiles (VMEM-budgeted), pad B so the grid divides --
    rows_total = -(-B // r)
    cap = max(8, min(max_rows_per_tile, (vmem_tile_budget // (Fp * 4)) // 8 * 8))
    if rows_total <= cap:
        tile_rows, grid_rows = rows_total, 1
    else:
        tile_rows = cap                           # multiple of 8
        grid_rows = -(-rows_total // tile_rows)
    B_pad = grid_rows * tile_rows * r
    if B_pad != B:
        x = jnp.pad(x, ((0, B_pad - B), (0, 0)))  # zero rows -> finite garbage, sliced off
    xp = x.reshape(grid_rows * tile_rows, Fp)     # free row-major reshape

    kernel = functools.partial(uan_kernel, num_clusters=K, pack=r)

    out_p = pl.pallas_call(
        kernel,
        out_shape=jax.ShapeDtypeStruct((grid_rows * tile_rows, Fp), out_dtype),
        grid_spec=pltpu.PrefetchScalarGridSpec(
            num_scalar_prefetch=0,
            grid=(grid_rows,),
            in_specs=[
                pl.BlockSpec((tile_rows, Fp), lambda i: (i, 0)),   # x (packed)
                pl.BlockSpec((Fp, rK), lambda i: (0, 0)),          # A^T
                pl.BlockSpec((Fp, rK), lambda i: (0, 0)),          # Bm^T
                pl.BlockSpec((rK, Fp), lambda i: (0, 0)),          # S1 = 1/(sigma+eps)
                pl.BlockSpec((rK, Fp), lambda i: (0, 0)),          # S2 = mu/(sigma+eps)
                pl.BlockSpec((1, rK), lambda i: (0, 0)),           # c
                pl.BlockSpec((1, rK), lambda i: (0, 0)),           # sqrt(lambda)
                pl.BlockSpec((1, Fp), lambda i: (0, 0)),           # weight
                pl.BlockSpec((1, Fp), lambda i: (0, 0)),           # bias
            ],
            out_specs=pl.BlockSpec((tile_rows, Fp), lambda i: (i, 0)),
        ),
        compiler_params=pltpu.CompilerParams(
            dimension_semantics=("parallel",)),
    )(xp, A_t, Bm_t, S1_bd, S2_bd, c_p, sl_p, w_p, b_p)

    return out_p.reshape(B_pad, F)[:B]


def uan_reference(x, mu_k, sigma_k, lambda_k, weight, bias, eps=EPS):
    """Plain-JAX mirror of the PyTorch forward (for correctness check)."""
    diff = x[:, None, :] - mu_k[None, :, :]
    sq = diff ** 2 / (2.0 * sigma_k[None, :, :] ** 2 + eps)
    log_probs = -sq.sum(-1) - jnp.log(jnp.prod(sigma_k, axis=-1) + eps)[None, :]
    log_probs = log_probs + jnp.log(lambda_k + eps)[None, :]
    posterior = jax.nn.softmax(log_probs, axis=1)
    x_norm = jnp.zeros_like(x)
    for k in range(mu_k.shape[0]):
        x_k = (x - mu_k[k]) / (sigma_k[k] + eps)
        x_norm = x_norm + posterior[:, k][:, None] * jnp.sqrt(lambda_k[k]) * x_k
    return weight * x_norm + bias


if __name__ == "__main__":
    B, F, K = 16, 32, NUM_CLUSTERS

    key = jax.random.PRNGKey(0)
    kx, kmu, ksig = jax.random.split(key, 3)

    x = jax.random.normal(kx, (B, F), dtype=jnp.float32)

    # Deterministic parameter init mirroring reset_parameters():
    lambda_k = jnp.full((K,), 1.0 / K, dtype=jnp.float32)
    mu_k = jax.random.uniform(kmu, (K, F), minval=-1.0, maxval=1.0,
                              dtype=jnp.float32)
    sigma_k = jnp.clip(
        jax.random.uniform(ksig, (K, F), minval=0.001, maxval=0.01,
                           dtype=jnp.float32),
        EPS, None)
    weight = jnp.ones((F,), dtype=jnp.float32)
    bias = jnp.zeros((F,), dtype=jnp.float32)

    out = jax.block_until_ready(
        uan_forward(x, mu_k, sigma_k, lambda_k, weight, bias))
    ref = uan_reference(x, mu_k, sigma_k, lambda_k, weight, bias)

    assert out.shape == (B, F)
    # Tolerance covers the approx-EUP reciprocal and f32 expansion of the
    # squared-distance term; cluster assignments are sharply peaked so the
    # outputs match closely.
    assert jnp.allclose(out, ref, rtol=5e-3, atol=5e-3), "mismatch vs reference"

    print("KERNEL_OK")
</pallas_src>

<mosaic_0001>
module attributes {stable_mosaic.version = 11 : i64} {
  func.func @uan_kernel(%arg0: i32, %arg1: memref<4x128xf32, #tpu.memory_space<vmem>>, %arg2: memref<128x12xf32, #tpu.memory_space<vmem>>, %arg3: memref<128x12xf32, #tpu.memory_space<vmem>>, %arg4: memref<12x128xf32, #tpu.memory_space<vmem>>, %arg5: memref<12x128xf32, #tpu.memory_space<vmem>>, %arg6: memref<1x12xf32, #tpu.memory_space<vmem>>, %arg7: memref<1x12xf32, #tpu.memory_space<vmem>>, %arg8: memref<1x128xf32, #tpu.memory_space<vmem>>, %arg9: memref<1x128xf32, #tpu.memory_space<vmem>>, %arg10: memref<4x128xf32, #tpu.memory_space<vmem>>) attributes {dimension_semantics = [#tpu.dimension_semantics<parallel>], iteration_bounds = array<i64: 1>, scalar_prefetch = 0 : i64, scratch_operands = 0 : i64, tpu.core_type = #tpu.core_type<tc>, window_params = [{transform_indices = @transform_0, window_bounds = array<i64: 4, 128>}, {pipeline_mode = #tpu.pipeline_mode<synchronous>, transform_indices = @transform_1, window_bounds = array<i64: 128, 12>}, {pipeline_mode = #tpu.pipeline_mode<synchronous>, transform_indices = @transform_2, window_bounds = array<i64: 128, 12>}, {pipeline_mode = #tpu.pipeline_mode<synchronous>, transform_indices = @transform_3, window_bounds = array<i64: 12, 128>}, {pipeline_mode = #tpu.pipeline_mode<synchronous>, transform_indices = @transform_4, window_bounds = array<i64: 12, 128>}, {pipeline_mode = #tpu.pipeline_mode<synchronous>, transform_indices = @transform_5, window_bounds = array<i64: 1, 12>}, {pipeline_mode = #tpu.pipeline_mode<synchronous>, transform_indices = @transform_6, window_bounds = array<i64: 1, 12>}, {pipeline_mode = #tpu.pipeline_mode<synchronous>, transform_indices = @transform_7, window_bounds = array<i64: 1, 128>}, {pipeline_mode = #tpu.pipeline_mode<synchronous>, transform_indices = @transform_8, window_bounds = array<i64: 1, 128>}, {transform_indices = @transform_9, window_bounds = array<i64: 4, 128>}]} {
    %c0 = arith.constant 0 : index
    %c0_0 = arith.constant 0 : index
    %0 = vector.load %arg1[%c0, %c0_0] : memref<4x128xf32, #tpu.memory_space<vmem>>, vector<4x128xf32>
    %1 = arith.mulf %0, %0 : vector<4x128xf32>
    %c0_1 = arith.constant 0 : index
    %c0_2 = arith.constant 0 : index
    %2 = vector.load %arg2[%c0_1, %c0_2] : memref<128x12xf32, #tpu.memory_space<vmem>>, vector<128x12xf32>
    %cst = arith.constant dense<0.000000e+00> : vector<4x12xf32>
    %3 = tpu.matmul %1, %2, %cst {dimension_numbers = #tpu.dot_dimension_numbers<[1], [0], [0], [1], [0, 0, 1, 1], [], []>, precision = #tpu.contract_precision<fp32>} : vector<4x128xf32>, vector<128x12xf32>, vector<4x12xf32> -> vector<4x12xf32>
    %c0_3 = arith.constant 0 : index
    %c0_4 = arith.constant 0 : index
    %4 = vector.load %arg3[%c0_3, %c0_4] : memref<128x12xf32, #tpu.memory_space<vmem>>, vector<128x12xf32>
    %cst_5 = arith.constant dense<0.000000e+00> : vector<4x12xf32>
    %5 = tpu.matmul %0, %4, %cst_5 {dimension_numbers = #tpu.dot_dimension_numbers<[1], [0], [0], [1], [0, 0, 1, 1], [], []>, precision = #tpu.contract_precision<fp32>} : vector<4x128xf32>, vector<128x12xf32>, vector<4x12xf32> -> vector<4x12xf32>
    %6 = arith.addf %3, %5 : vector<4x12xf32>
    %c0_6 = arith.constant 0 : index
    %c0_7 = arith.constant 0 : index
    %7 = vector.load %arg6[%c0_6, %c0_7] : memref<1x12xf32, #tpu.memory_space<vmem>>, vector<1x12xf32>
    %8 = vector.broadcast %7 : vector<1x12xf32> to vector<4x12xf32>
    %9 = arith.addf %6, %8 : vector<4x12xf32>
    %10 = vector.extract_strided_slice %9 {offsets = [0, 0], sizes = [4, 3], strides = [1, 1]} : vector<4x12xf32> to vector<4x3xf32>
    %cst_8 = arith.constant dense<0xFF800000> : vector<4xf32>
    %11 = vector.multi_reduction <maximumf>, %10, %cst_8 [1] : vector<4x3xf32> to vector<4xf32>
    %12 = vector.shape_cast %11 : vector<4xf32> to vector<4x1xf32>
    %13 = vector.broadcast %12 : vector<4x1xf32> to vector<4x3xf32>
    %14 = arith.subf %10, %13 : vector<4x3xf32>
    %15 = math.exp %14 : vector<4x3xf32>
    %cst_9 = arith.constant dense<0.000000e+00> : vector<4xf32>
    %16 = vector.multi_reduction <add>, %15, %cst_9 [1] : vector<4x3xf32> to vector<4xf32>
    %17 = vector.shape_cast %16 : vector<4xf32> to vector<4x1xf32>
    %18 = tpu.reciprocal %17 {approx = true} : vector<4x1xf32> -> vector<4x1xf32>
    %19 = vector.broadcast %18 : vector<4x1xf32> to vector<4x3xf32>
    %20 = arith.mulf %15, %19 : vector<4x3xf32>
    %21 = vector.extract_strided_slice %9 {offsets = [0, 3], sizes = [4, 3], strides = [1, 1]} : vector<4x12xf32> to vector<4x3xf32>
    %cst_10 = arith.constant dense<0xFF800000> : vector<4xf32>
    %22 = vector.multi_reduction <maximumf>, %21, %cst_10 [1] : vector<4x3xf32> to vector<4xf32>
    %23 = vector.shape_cast %22 : vector<4xf32> to vector<4x1xf32>
    %24 = vector.broadcast %23 : vector<4x1xf32> to vector<4x3xf32>
    %25 = arith.subf %21, %24 : vector<4x3xf32>
    %26 = math.exp %25 : vector<4x3xf32>
    %cst_11 = arith.constant dense<0.000000e+00> : vector<4xf32>
    %27 = vector.multi_reduction <add>, %26, %cst_11 [1] : vector<4x3xf32> to vector<4xf32>
    %28 = vector.shape_cast %27 : vector<4xf32> to vector<4x1xf32>
    %29 = tpu.reciprocal %28 {approx = true} : vector<4x1xf32> -> vector<4x1xf32>
    %30 = vector.broadcast %29 : vector<4x1xf32> to vector<4x3xf32>
    %31 = arith.mulf %26, %30 : vector<4x3xf32>
    %32 = vector.extract_strided_slice %9 {offsets = [0, 6], sizes = [4, 3], strides = [1, 1]} : vector<4x12xf32> to vector<4x3xf32>
    %cst_12 = arith.constant dense<0xFF800000> : vector<4xf32>
    %33 = vector.multi_reduction <maximumf>, %32, %cst_12 [1] : vector<4x3xf32> to vector<4xf32>
    %34 = vector.shape_cast %33 : vector<4xf32> to vector<4x1xf32>
    %35 = vector.broadcast %34 : vector<4x1xf32> to vector<4x3xf32>
    %36 = arith.subf %32, %35 : vector<4x3xf32>
    %37 = math.exp %36 : vector<4x3xf32>
    %cst_13 = arith.constant dense<0.000000e+00> : vector<4xf32>
    %38 = vector.multi_reduction <add>, %37, %cst_13 [1] : vector<4x3xf32> to vector<4xf32>
    %39 = vector.shape_cast %38 : vector<4xf32> to vector<4x1xf32>
    %40 = tpu.reciprocal %39 {approx = true} : vector<4x1xf32> -> vector<4x1xf32>
    %41 = vector.broadcast %40 : vector<4x1xf32> to vector<4x3xf32>
    %42 = arith.mulf %37, %41 : vector<4x3xf32>
    %43 = vector.extract_strided_slice %9 {offsets = [0, 9], sizes = [4, 3], strides = [1, 1]} : vector<4x12xf32> to vector<4x3xf32>
    %cst_14 = arith.constant dense<0xFF800000> : vector<4xf32>
    %44 = vector.multi_reduction <maximumf>, %43, %cst_14 [1] : vector<4x3xf32> to vector<4xf32>
    %45 = vector.shape_cast %44 : vector<4xf32> to vector<4x1xf32>
    %46 = vector.broadcast %45 : vector<4x1xf32> to vector<4x3xf32>
    %47 = arith.subf %43, %46 : vector<4x3xf32>
    %48 = math.exp %47 : vector<4x3xf32>
    %cst_15 = arith.constant dense<0.000000e+00> : vector<4xf32>
    %49 = vector.multi_reduction <add>, %48, %cst_15 [1] : vector<4x3xf32> to vector<4xf32>
    %50 = vector.shape_cast %49 : vector<4xf32> to vector<4x1xf32>
    %51 = tpu.reciprocal %50 {approx = true} : vector<4x1xf32> -> vector<4x1xf32>
    %52 = vector.broadcast %51 : vector<4x1xf32> to vector<4x3xf32>
    %53 = arith.mulf %48, %52 : vector<4x3xf32>
    %54 = tpu.concatenate %20, %31, %42, %53 in 1 : vector<4x3xf32>, vector<4x3xf32>, vector<4x3xf32>, vector<4x3xf32> -> vector<4x12xf32>
    %c0_16 = arith.constant 0 : index
    %c0_17 = arith.constant 0 : index
    %55 = vector.load %arg7[%c0_16, %c0_17] : memref<1x12xf32, #tpu.memory_space<vmem>>, vector<1x12xf32>
    %56 = vector.broadcast %55 : vector<1x12xf32> to vector<4x12xf32>
    %57 = arith.mulf %54, %56 : vector<4x12xf32>
    %c0_18 = arith.constant 0 : index
    %c0_19 = arith.constant 0 : index
    %58 = vector.load %arg4[%c0_18, %c0_19] : memref<12x128xf32, #tpu.memory_space<vmem>>, vector<12x128xf32>
    %cst_20 = arith.constant dense<0.000000e+00> : vector<4x128xf32>
    %59 = tpu.matmul %57, %58, %cst_20 {dimension_numbers = #tpu.dot_dimension_numbers<[1], [0], [0], [1], [0, 0, 1, 1], [], []>, precision = #tpu.contract_precision<fp32>} : vector<4x12xf32>, vector<12x128xf32>, vector<4x128xf32> -> vector<4x128xf32>
    %c0_21 = arith.constant 0 : index
    %c0_22 = arith.constant 0 : index
    %60 = vector.load %arg5[%c0_21, %c0_22] : memref<12x128xf32, #tpu.memory_space<vmem>>, vector<12x128xf32>
    %cst_23 = arith.constant dense<0.000000e+00> : vector<4x128xf32>
    %61 = tpu.matmul %57, %60, %cst_23 {dimension_numbers = #tpu.dot_dimension_numbers<[1], [0], [0], [1], [0, 0, 1, 1], [], []>, precision = #tpu.contract_precision<fp32>} : vector<4x12xf32>, vector<12x128xf32>, vector<4x128xf32> -> vector<4x128xf32>
    %c0_24 = arith.constant 0 : index
    %c0_25 = arith.constant 0 : index
    %62 = vector.load %arg8[%c0_24, %c0_25] : memref<1x128xf32, #tpu.memory_space<vmem>>, vector<1x128xf32>
    %63 = arith.mulf %0, %59 : vector<4x128xf32>
    %64 = arith.subf %63, %61 : vector<4x128xf32>
    %65 = vector.broadcast %62 : vector<1x128xf32> to vector<4x128xf32>
    %66 = arith.mulf %65, %64 : vector<4x128xf32>
    %c0_26 = arith.constant 0 : index
    %c0_27 = arith.constant 0 : index
    %67 = vector.load %arg9[%c0_26, %c0_27] : memref<1x128xf32, #tpu.memory_space<vmem>>, vector<1x128xf32>
    %68 = vector.broadcast %67 : vector<1x128xf32> to vector<4x128xf32>
    %69 = arith.addf %66, %68 : vector<4x128xf32>
    %c0_28 = arith.constant 0 : index
    %c0_29 = arith.constant 0 : index
    %70 = vector.load %arg10[%c0_28, %c0_29] : memref<4x128xf32, #tpu.memory_space<vmem>>, vector<4x128xf32>
    tpu.vector_store %arg10[%c0_28, %c0_29], %69 {strides = array<i32>} : memref<4x128xf32, #tpu.memory_space<vmem>>, vector<4x128xf32>,
    return
  }
  func.func @transform_0(%arg0: i32) -> (i32, i32) {
    %c0_i32 = arith.constant 0 : i32
    %c0_i32_0 = arith.constant 0 : i32
    return %arg0, %c0_i32 : i32, i32
  }
  func.func @transform_1(%arg0: i32) -> (i32, i32) {
    %c0_i32 = arith.constant 0 : i32
    %c0_i32_0 = arith.constant 0 : i32
    %c0_i32_1 = arith.constant 0 : i32
    return %c0_i32, %c0_i32_0 : i32, i32
  }
  func.func @transform_2(%arg0: i32) -> (i32, i32) {
    %c0_i32 = arith.constant 0 : i32
    %c0_i32_0 = arith.constant 0 : i32
    %c0_i32_1 = arith.constant 0 : i32
    return %c0_i32, %c0_i32_0 : i32, i32
  }
  func.func @transform_3(%arg0: i32) -> (i32, i32) {
    %c0_i32 = arith.constant 0 : i32
    %c0_i32_0 = arith.constant 0 : i32
    %c0_i32_1 = arith.constant 0 : i32
    return %c0_i32, %c0_i32_0 : i32, i32
  }
  func.func @transform_4(%arg0: i32) -> (i32, i32) {
    %c0_i32 = arith.constant 0 : i32
    %c0_i32_0 = arith.constant 0 : i32
    %c0_i32_1 = arith.constant 0 : i32
    return %c0_i32, %c0_i32_0 : i32, i32
  }
  func.func @transform_5(%arg0: i32) -> (i32, i32) {
    %c0_i32 = arith.constant 0 : i32
    %c0_i32_0 = arith.constant 0 : i32
    %c0_i32_1 = arith.constant 0 : i32
    return %c0_i32, %c0_i32_0 : i32, i32
  }
  func.func @transform_6(%arg0: i32) -> (i32, i32) {
    %c0_i32 = arith.constant 0 : i32
    %c0_i32_0 = arith.constant 0 : i32
    %c0_i32_1 = arith.constant 0 : i32
    return %c0_i32, %c0_i32_0 : i32, i32
  }
  func.func @transform_7(%arg0: i32) -> (i32, i32) {
    %c0_i32 = arith.constant 0 : i32
    %c0_i32_0 = arith.constant 0 : i32
    %c0_i32_1 = arith.constant 0 : i32
    return %c0_i32, %c0_i32_0 : i32, i32
  }
  func.func @transform_8(%arg0: i32) -> (i32, i32) {
    %c0_i32 = arith.constant 0 : i32
    %c0_i32_0 = arith.constant 0 : i32
    %c0_i32_1 = arith.constant 0 : i32
    return %c0_i32, %c0_i32_0 : i32, i32
  }
  func.func @transform_9(%arg0: i32) -> (i32, i32) {
    %c0_i32 = arith.constant 0 : i32
    %c0_i32_0 = arith.constant 0 : i32
    return %arg0, %c0_i32 : i32, i32
  }
}

</mosaic_0001>

<llo_original>
// kernel: tpu_custom_call.1
$region0: #{tpu_custom_call.1}
  #allocation0 [shape = 'u32[]', space=smem, size = 0x4, offset = 0x4, fixed_abs, tag = 'smem constant byte address 0x4 - core index']
  #allocation1 [shape = 'u32[144,128]{1,0:T(1,128)}', space=vmem, size = 0x12000, scoped, tag = 'internal scratch']
  %s0 = inlined_call_operand.vmem [shape: f32[4,128], index: 0, kind: input, shape index: {}]
  %s1 = inlined_call_operand.vmem [shape: f32[128,12], index: 1, kind: input, shape index: {}]
  %s2 = inlined_call_operand.vmem [shape: f32[128,12], index: 2, kind: input, shape index: {}]
  %s3 = inlined_call_operand.vmem [shape: f32[12,128], index: 3, kind: input, shape index: {}]
  %s4 = inlined_call_operand.vmem [shape: f32[12,128], index: 4, kind: input, shape index: {}]
  %s5 = inlined_call_operand.vmem [shape: f32[1,12], index: 5, kind: input, shape index: {}]
  %s6 = inlined_call_operand.vmem [shape: f32[1,12], index: 6, kind: input, shape index: {}]
  %s7 = inlined_call_operand.vmem [shape: f32[1,128], index: 7, kind: input, shape index: {}]
  %s8 = inlined_call_operand.vmem [shape: f32[1,128], index: 8, kind: input, shape index: {}]
  %s9 = inlined_call_operand.hbm [shape: f32[4,128], index: 9, kind: output, shape index: {}]
  %s10 = sld [smem:[#allocation0]]
  $region46: #{tpu_custom_call.1} parent=0
    _
  %s12 = ssub.s32 1, %s10
  %s13 = scalar_select 0, %s12, %s10
  $region1: #{tpu_custom_call.1} parent=0
    #allocation2 [shape = 'u8[2048]{0}', space=vmem, size = 0x800, scoped, tag = 'output window, operand 0, single buffered']
    #allocation3 [shape = 's32[1]{0}', space=sflag, size = 0x4, scoped, tag = 'scoped memory for tpu_custom_call.1']
    %14 = vsyncpa [#allocation3], 0
    // Predicated region
    $region2: #{tpu_custom_call.1} parent=1 // pred_check
      _
    $region3: #{tpu_custom_call.1} parent=1 // pred_check_branch
      %16 = sbr.rel (0) target = $region5
    $region4: #{tpu_custom_call.1} parent=1 // pred_region
      _
    $region5: #{tpu_custom_call.1} parent=1 // pred_fallthru
      _
    // Predicated region
    $region6: #{tpu_custom_call.1} parent=1 // pred_check
      _
    $region7: #{tpu_custom_call.1} parent=1 // pred_check_branch
      %18 = sbr.rel (0) target = $region9
    $region8: #{tpu_custom_call.1} parent=1 // pred_region
      _
    $region9: #{tpu_custom_call.1} parent=1 // pred_fallthru
      _
    // Predicated region
    $region10: #{tpu_custom_call.1} parent=1 // pred_check
      _
    $region11: #{tpu_custom_call.1} parent=1 // pred_check_branch
      %20 = sbr.rel (0) target = $region13
    $region12: #{tpu_custom_call.1} parent=1 // pred_region
      _
    $region13: #{tpu_custom_call.1} parent=1 // pred_fallthru
      _
    // Predicated region
    $region14: #{tpu_custom_call.1} parent=1 // pred_check
      _
    $region15: #{tpu_custom_call.1} parent=1 // pred_check_branch
      %22 = sbr.rel (0) target = $region17
    $region16: #{tpu_custom_call.1} parent=1 // pred_region
      _
    $region17: #{tpu_custom_call.1} parent=1 // pred_fallthru
      _
    // Predicated region
    $region18: #{tpu_custom_call.1} parent=1 // pred_check
      _
    $region19: #{tpu_custom_call.1} parent=1 // pred_check_branch
      %24 = sbr.rel (0) target = $region21
    $region20: #{tpu_custom_call.1} parent=1 // pred_region
      _
    $region21: #{tpu_custom_call.1} parent=1 // pred_fallthru
      _
    // Predicated region
    $region22: #{tpu_custom_call.1} parent=1 // pred_check
      _
    $region23: #{tpu_custom_call.1} parent=1 // pred_check_branch
      %26 = sbr.rel (0) target = $region25
    $region24: #{tpu_custom_call.1} parent=1 // pred_region
      _
    $region25: #{tpu_custom_call.1} parent=1 // pred_fallthru
      _
    // Predicated region
    $region26: #{tpu_custom_call.1} parent=1 // pred_check
      _
    $region27: #{tpu_custom_call.1} parent=1 // pred_check_branch
      %28 = sbr.rel (0) target = $region29
    $region28: #{tpu_custom_call.1} parent=1 // pred_region
      _
    $region29: #{tpu_custom_call.1} parent=1 // pred_fallthru
      _
    // Predicated region
    $region30: #{tpu_custom_call.1} parent=1 // pred_check
      _
    $region31: #{tpu_custom_call.1} parent=1 // pred_check_branch
      %30 = sbr.rel (0) target = $region33
    $region32: #{tpu_custom_call.1} parent=1 // pred_region
      _
    $region33: #{tpu_custom_call.1} parent=1 // pred_fallthru
      _
    // Predicated region
    $region34: #{tpu_custom_call.1} parent=1 // pred_check
      _
    $region35: #{tpu_custom_call.1} parent=1 // pred_check_branch
      %32 = sbr.rel (0) target = $region37
    $region36: #{tpu_custom_call.1} parent=1 // pred_region
      _
    $region37: #{tpu_custom_call.1} parent=1 // pred_fallthru
      _
    %v33 = vld [vmem:[%s0] sm:$0xf]
    %v34 = vmul.f32 %v33, %v33
    %v35 = vld [vmem:[%s1] sm:$0xff]
    %v36 = vld [vmem:[%s1 + $0x8] sm:$0xff]
    %v37 = vld [vmem:[%s1 + $0x10] sm:$0xff]
    %v38 = vld [vmem:[%s1 + $0x18] sm:$0xff]
    %v39 = vld [vmem:[%s1 + $0x20] sm:$0xff]
    %v40 = vld [vmem:[%s1 + $0x28] sm:$0xff]
    %v41 = vld [vmem:[%s1 + $0x30] sm:$0xff]
    %v42 = vld [vmem:[%s1 + $0x38] sm:$0xff]
    %v43 = vld [vmem:[%s1 + $0x40] sm:$0xff]
    %v44 = vld [vmem:[%s1 + $0x48] sm:$0xff]
    %v45 = vld [vmem:[%s1 + $0x50] sm:$0xff]
    %v46 = vld [vmem:[%s1 + $0x58] sm:$0xff]
    %v47 = vld [vmem:[%s1 + $0x60] sm:$0xff]
    %v48 = vld [vmem:[%s1 + $0x68] sm:$0xff]
    %v49 = vld [vmem:[%s1 + $0x70] sm:$0xff]
    %v50 = vld [vmem:[%s1 + $0x78] sm:$0xff]
    %v51 = vld [vmem:[%s2] sm:$0xff]
    %v52 = vld [vmem:[%s2 + $0x8] sm:$0xff]
    %v53 = vld [vmem:[%s2 + $0x10] sm:$0xff]
    %v54 = vld [vmem:[%s2 + $0x18] sm:$0xff]
    %v55 = vld [vmem:[%s2 + $0x20] sm:$0xff]
    %v56 = vld [vmem:[%s2 + $0x28] sm:$0xff]
    %v57 = vld [vmem:[%s2 + $0x30] sm:$0xff]
    %v58 = vld [vmem:[%s2 + $0x38] sm:$0xff]
    %v59 = vld [vmem:[%s2 + $0x40] sm:$0xff]
    %v60 = vld [vmem:[%s2 + $0x48] sm:$0xff]
    %v61 = vld [vmem:[%s2 + $0x50] sm:$0xff]
    %v62 = vld [vmem:[%s2 + $0x58] sm:$0xff]
    %v63 = vld [vmem:[%s2 + $0x60] sm:$0xff]
    %v64 = vld [vmem:[%s2 + $0x68] sm:$0xff]
    %v65 = vld [vmem:[%s2 + $0x70] sm:$0xff]
    %v66 = vld [vmem:[%s2 + $0x78] sm:$0xff]
    %67 = vmatprep.subr.mxu0 0.0
    %v68 = vand.u32 %v66, 4294901760
    %69 = vmatpush1.msra.mxu0 %v68
    %70 = vmatprep.subr.mxu0 0.0
    %v71 = vand.u32 %v65, 4294901760
    %72 = vmatpush1.msra.mxu0 %v71
    %73 = vmatprep.subr.mxu0 0.0
    %v74 = vand.u32 %v64, 4294901760
    %75 = vmatpush1.msra.mxu0 %v74
    %76 = vmatprep.subr.mxu0 0.0
    %v77 = vand.u32 %v63, 4294901760
    %78 = vmatpush1.msra.mxu0 %v77
    %79 = vmatprep.subr.mxu0 0.0
    %v80 = vand.u32 %v62, 4294901760
    %81 = vmatpush1.msra.mxu0 %v80
    %82 = vmatprep.subr.mxu0 0.0
    %v83 = vand.u32 %v61, 4294901760
    %84 = vmatpush1.msra.mxu0 %v83
    %85 = vmatprep.subr.mxu0 0.0
    %v86 = vand.u32 %v60, 4294901760
    %87 = vmatpush1.msra.mxu0 %v86
    %88 = vmatprep.subr.mxu0 0.0
    %v89 = vand.u32 %v59, 4294901760
    %90 = vmatpush1.msra.mxu0 %v89
    %91 = vmatprep.subr.mxu0 0.0
    %v92 = vand.u32 %v58, 4294901760
    %93 = vmatpush1.msra.mxu0 %v92
    %94 = vmatprep.subr.mxu0 0.0
    %v95 = vand.u32 %v57, 4294901760
    %96 = vmatpush1.msra.mxu0 %v95
    %97 = vmatprep.subr.mxu0 0.0
    %v98 = vand.u32 %v56, 4294901760
    %99 = vmatpush1.msra.mxu0 %v98
    %100 = vmatprep.subr.mxu0 0.0
    %v101 = vand.u32 %v55, 4294901760
    %102 = vmatpush1.msra.mxu0 %v101
    %103 = vmatprep.subr.mxu0 0.0
    %v104 = vand.u32 %v54, 4294901760
    %105 = vmatpush1.msra.mxu0 %v104
    %106 = vmatprep.subr.mxu0 0.0
    %v107 = vand.u32 %v53, 4294901760
    %108 = vmatpush1.msra.mxu0 %v107
    %109 = vmatprep.subr.mxu0 0.0
    %v110 = vand.u32 %v52, 4294901760
    %111 = vmatpush1.msra.mxu0 %v110
    %112 = vmatprep.subr.mxu0 0.0
    %v113 = vand.u32 %v51, 4294901760
    %114 = vmatpush1.msra.mxu0 %v113
    %115 = vmatprep.subr.mxu0 0.0
    %116 = vmatpush2.msra.mxu0 0.0
    %117 = vmatprep.subr.mxu0 0.0
    %118 = vmatpush2.msra.mxu0 0.0
    %119 = vmatprep.subr.mxu0 0.0
    %120 = vmatpush2.msra.mxu0 0.0
    %121 = vmatprep.subr.mxu0 0.0
    %122 = vmatpush2.msra.mxu0 0.0
    %123 = vmatprep.subr.mxu0 0.0
    %124 = vmatpush2.msra.mxu0 0.0
    %125 = vmatprep.subr.mxu0 0.0
    %126 = vmatpush2.msra.mxu0 0.0
    %127 = vmatprep.subr.mxu0 0.0
    %128 = vmatpush2.msra.mxu0 0.0
    %129 = vmatprep.subr.mxu0 0.0
    %130 = vmatpush2.msra.mxu0 0.0
    %131 = vmatprep.subr.mxu0 0.0
    %132 = vmatpush2.msra.mxu0 0.0
    %133 = vmatprep.subr.mxu0 0.0
    %134 = vmatpush2.msra.mxu0 0.0
    %135 = vmatprep.subr.mxu0 0.0
    %136 = vmatpush2.msra.mxu0 0.0
    %137 = vmatprep.subr.mxu0 0.0
    %138 = vmatpush2.msra.mxu0 0.0
    %139 = vmatprep.subr.mxu0 0.0
    %140 = vmatpush2.msra.mxu0 0.0
    %141 = vmatprep.subr.mxu0 0.0
    %142 = vmatpush2.msra.mxu0 0.0
    %143 = vmatprep.subr.mxu0 0.0
    %144 = vmatpush2.msra.mxu0 0.0
    %145 = vmatprep.subr.mxu0 0.0
    %146 = vmatpush2.msra.mxu0 0.0
    %147 = vmatprep.mubr.f32.mxu0 0.0
    %v148 = vand.u32 %v33, 4294901760
    %v149 = vsub.f32 %v33, %v148
    %v150 = vand.u32 %v149, 4294901760
    %v151 = vsub.f32 %v149, %v150
    %v152 = vand.u32 %v151, 4294901760
    %153 = vmatmul.mubr.f32.gmra.mxu0 %v152
    %v154 = vpop.f32.mrf.mxu0
    %v155 = vadd.f32 0.0, %v154
    %v156 = vpop.f32.mrf.mxu0
    %157 = vdwg.mxu0
    %158 = vmatprep.subr.mxu0 0.0
    %v159 = vand.u32 %v66, 4294901760
    %v160 = vsub.f32 %v66, %v159
    %v161 = vand.u32 %v160, 4294901760
    %v162 = vsub.f32 %v160, %v161
    %v163 = vand.u32 %v162, 4294901760
    %164 = vmatpush1.msra.mxu0 %v163
    %165 = vmatprep.subr.mxu0 0.0
    %v166 = vand.u32 %v65, 4294901760
    %v167 = vsub.f32 %v65, %v166
    %v168 = vand.u32 %v167, 4294901760
    %v169 = vsub.f32 %v167, %v168
    %v170 = vand.u32 %v169, 4294901760
    %171 = vmatpush1.msra.mxu0 %v170
    %172 = vmatprep.subr.mxu0 0.0
    %v173 = vand.u32 %v64, 4294901760
    %v174 = vsub.f32 %v64, %v173
    %v175 = vand.u32 %v174, 4294901760
    %v176 = vsub.f32 %v174, %v175
    %v177 = vand.u32 %v176, 4294901760
    %178 = vmatpush1.msra.mxu0 %v177
    %179 = vmatprep.subr.mxu0 0.0
    %v180 = vand.u32 %v63, 4294901760
    %v181 = vsub.f32 %v63, %v180
    %v182 = vand.u32 %v181, 4294901760
    %v183 = vsub.f32 %v181, %v182
    %v184 = vand.u32 %v183, 4294901760
    %185 = vmatpush1.msra.mxu0 %v184
    %186 = vmatprep.subr.mxu0 0.0
    %v187 = vand.u32 %v62, 4294901760
    %v188 = vsub.f32 %v62, %v187
    %v189 = vand.u32 %v188, 4294901760
    %v190 = vsub.f32 %v188, %v189
    %v191 = vand.u32 %v190, 4294901760
    %192 = vmatpush1.msra.mxu0 %v191
    %193 = vmatprep.subr.mxu0 0.0
    %v194 = vand.u32 %v61, 4294901760
    %v195 = vsub.f32 %v61, %v194
    %v196 = vand.u32 %v195, 4294901760
    %v197 = vsub.f32 %v195, %v196
    %v198 = vand.u32 %v197, 4294901760
    %199 = vmatpush1.msra.mxu0 %v198
    %200 = vmatprep.subr.mxu0 0.0
    %v201 = vand.u32 %v60, 4294901760
    %v202 = vsub.f32 %v60, %v201
    %v203 = vand.u32 %v202, 4294901760
    %v204 = vsub.f32 %v202, %v203
    %v205 = vand.u32 %v204, 4294901760
    %206 = vmatpush1.msra.mxu0 %v205
    %207 = vmatprep.subr.mxu0 0.0
    %v208 = vand.u32 %v59, 4294901760
    %v209 = vsub.f32 %v59, %v208
    %v210 = vand.u32 %v209, 4294901760
    %v211 = vsub.f32 %v209, %v210
    %v212 = vand.u32 %v211, 4294901760
    %213 = vmatpush1.msra.mxu0 %v212
    %214 = vmatprep.subr.mxu0 0.0
    %v215 = vand.u32 %v58, 4294901760
    %v216 = vsub.f32 %v58, %v215
    %v217 = vand.u32 %v216, 4294901760
    %v218 = vsub.f32 %v216, %v217
    %v219 = vand.u32 %v218, 4294901760
    %220 = vmatpush1.msra.mxu0 %v219
    %221 = vmatprep.subr.mxu0 0.0
    %v222 = vand.u32 %v57, 4294901760
    %v223 = vsub.f32 %v57, %v222
    %v224 = vand.u32 %v223, 4294901760
    %v225 = vsub.f32 %v223, %v224
    %v226 = vand.u32 %v225, 4294901760
    %227 = vmatpush1.msra.mxu0 %v226
    %228 = vmatprep.subr.mxu0 0.0
    %v229 = vand.u32 %v56, 4294901760
    %v230 = vsub.f32 %v56, %v229
    %v231 = vand.u32 %v230, 4294901760
    %v232 = vsub.f32 %v230, %v231
    %v233 = vand.u32 %v232, 4294901760
    %234 = vmatpush1.msra.mxu0 %v233
    %235 = vmatprep.subr.mxu0 0.0
    %v236 = vand.u32 %v55, 4294901760
    %v237 = vsub.f32 %v55, %v236
    %v238 = vand.u32 %v237, 4294901760
    %v239 = vsub.f32 %v237, %v238
    %v240 = vand.u32 %v239, 4294901760
    %241 = vmatpush1.msra.mxu0 %v240
    %242 = vmatprep.subr.mxu0 0.0
    %v243 = vand.u32 %v54, 4294901760
    %v244 = vsub.f32 %v54, %v243
    %v245 = vand.u32 %v244, 4294901760
    %v246 = vsub.f32 %v244, %v245
    %v247 = vand.u32 %v246, 4294901760
    %248 = vmatpush1.msra.mxu0 %v247
    %249 = vmatprep.subr.mxu0 0.0
    %v250 = vand.u32 %v53, 4294901760
    %v251 = vsub.f32 %v53, %v250
    %v252 = vand.u32 %v251, 4294901760
    %v253 = vsub.f32 %v251, %v252
    %v254 = vand.u32 %v253, 4294901760
    %255 = vmatpush1.msra.mxu0 %v254
    %256 = vmatprep.subr.mxu0 0.0
    %v257 = vand.u32 %v52, 4294901760
    %v258 = vsub.f32 %v52, %v257
    %v259 = vand.u32 %v258, 4294901760
    %v260 = vsub.f32 %v258, %v259
    %v261 = vand.u32 %v260, 4294901760
    %262 = vmatpush1.msra.mxu0 %v261
    %263 = vmatprep.subr.mxu0 0.0
    %v264 = vand.u32 %v51, 4294901760
    %v265 = vsub.f32 %v51, %v264
    %v266 = vand.u32 %v265, 4294901760
    %v267 = vsub.f32 %v265, %v266
    %v268 = vand.u32 %v267, 4294901760
    %269 = vmatpush1.msra.mxu0 %v268
    %270 = vmatprep.subr.mxu0 0.0
    %271 = vmatpush2.msra.mxu0 0.0
    %272 = vmatprep.subr.mxu0 0.0
    %273 = vmatpush2.msra.mxu0 0.0
    %274 = vmatprep.subr.mxu0 0.0
    %275 = vmatpush2.msra.mxu0 0.0
    %276 = vmatprep.subr.mxu0 0.0
    %277 = vmatpush2.msra.mxu0 0.0
    %278 = vmatprep.subr.mxu0 0.0
    %279 = vmatpush2.msra.mxu0 0.0
    %280 = vmatprep.subr.mxu0 0.0
    %281 = vmatpush2.msra.mxu0 0.0
    %282 = vmatprep.subr.mxu0 0.0
    %283 = vmatpush2.msra.mxu0 0.0
    %284 = vmatprep.subr.mxu0 0.0
    %285 = vmatpush2.msra.mxu0 0.0
    %286 = vmatprep.subr.mxu0 0.0
    %287 = vmatpush2.msra.mxu0 0.0
    %288 = vmatprep.subr.mxu0 0.0
    %289 = vmatpush2.msra.mxu0 0.0
    %290 = vmatprep.subr.mxu0 0.0
    %291 = vmatpush2.msra.mxu0 0.0
    %292 = vmatprep.subr.mxu0 0.0
    %293 = vmatpush2.msra.mxu0 0.0
    %294 = vmatprep.subr.mxu0 0.0
    %295 = vmatpush2.msra.mxu0 0.0
    %296 = vmatprep.subr.mxu0 0.0
    %297 = vmatpush2.msra.mxu0 0.0
    %298 = vmatprep.subr.mxu0 0.0
    %299 = vmatpush2.msra.mxu0 0.0
    %300 = vmatprep.subr.mxu0 0.0
    %301 = vmatpush2.msra.mxu0 0.0
    %302 = vmatprep.mubr.f32.mxu0 0.0
    %v303 = vand.u32 %v33, 4294901760
    %304 = vmatmul.mubr.f32.gmra.mxu0 %v303
    %v305 = vpop.f32.mrf.mxu0
    %v306 = vadd.f32 %v155, %v305
    %v307 = vpop.f32.mrf.mxu0
    %308 = vdwg.mxu0
    %309 = vmatprep.subr.mxu0 0.0
    %v310 = vand.u32 %v66, 4294901760
    %v311 = vsub.f32 %v66, %v310
    %312 = vmatpush1.msra.mxu0 %v311
    %313 = vmatprep.subr.mxu0 0.0
    %v314 = vand.u32 %v65, 4294901760
    %v315 = vsub.f32 %v65, %v314
    %316 = vmatpush1.msra.mxu0 %v315
    %317 = vmatprep.subr.mxu0 0.0
    %v318 = vand.u32 %v64, 4294901760
    %v319 = vsub.f32 %v64, %v318
    %320 = vmatpush1.msra.mxu0 %v319
    %321 = vmatprep.subr.mxu0 0.0
    %v322 = vand.u32 %v63, 4294901760
    %v323 = vsub.f32 %v63, %v322
    %324 = vmatpush1.msra.mxu0 %v323
    %325 = vmatprep.subr.mxu0 0.0
    %v326 = vand.u32 %v62, 4294901760
    %v327 = vsub.f32 %v62, %v326
    %328 = vmatpush1.msra.mxu0 %v327
    %329 = vmatprep.subr.mxu0 0.0
    %v330 = vand.u32 %v61, 4294901760
    %v331 = vsub.f32 %v61, %v330
    %332 = vmatpush1.msra.mxu0 %v331
    %333 = vmatprep.subr.mxu0 0.0
    %v334 = vand.u32 %v60, 4294901760
    %v335 = vsub.f32 %v60, %v334
    %336 = vmatpush1.msra.mxu0 %v335
    %337 = vmatprep.subr.mxu0 0.0
    %v338 = vand.u32 %v59, 4294901760
    %v339 = vsub.f32 %v59, %v338
    %340 = vmatpush1.msra.mxu0 %v339
    %341 = vmatprep.subr.mxu0 0.0
    %v342 = vand.u32 %v58, 4294901760
    %v343 = vsub.f32 %v58, %v342
    %344 = vmatpush1.msra.mxu0 %v343
    %345 = vmatprep.subr.mxu0 0.0
    %v346 = vand.u32 %v57, 4294901760
    %v347 = vsub.f32 %v57, %v346
    %348 = vmatpush1.msra.mxu0 %v347
    %349 = vmatprep.subr.mxu0 0.0
    %v350 = vand.u32 %v56, 4294901760
    %v351 = vsub.f32 %v56, %v350
    %352 = vmatpush1.msra.mxu0 %v351
    %353 = vmatprep.subr.mxu0 0.0
    %v354 = vand.u32 %v55, 4294901760
    %v355 = vsub.f32 %v55, %v354
    %356 = vmatpush1.msra.mxu0 %v355
    %357 = vmatprep.subr.mxu0 0.0
    %v358 = vand.u32 %v54, 4294901760
    %v359 = vsub.f32 %v54, %v358
    %360 = vmatpush1.msra.mxu0 %v359
    %361 = vmatprep.subr.mxu0 0.0
    %v362 = vand.u32 %v53, 4294901760
    %v363 = vsub.f32 %v53, %v362
    %364 = vmatpush1.msra.mxu0 %v363
    %365 = vmatprep.subr.mxu0 0.0
    %v366 = vand.u32 %v52, 4294901760
    %v367 = vsub.f32 %v52, %v366
    %368 = vmatpush1.msra.mxu0 %v367
    %369 = vmatprep.subr.mxu0 0.0
    %v370 = vand.u32 %v51, 4294901760
    %v371 = vsub.f32 %v51, %v370
    %372 = vmatpush1.msra.mxu0 %v371
    %373 = vmatprep.subr.mxu0 0.0
    %374 = vmatpush2.msra.mxu0 0.0
    %375 = vmatprep.subr.mxu0 0.0
    %376 = vmatpush2.msra.mxu0 0.0
    %377 = vmatprep.subr.mxu0 0.0
    %378 = vmatpush2.msra.mxu0 0.0
    %379 = vmatprep.subr.mxu0 0.0
    %380 = vmatpush2.msra.mxu0 0.0
    %381 = vmatprep.subr.mxu0 0.0
    %382 = vmatpush2.msra.mxu0 0.0
    %383 = vmatprep.subr.mxu0 0.0
    %384 = vmatpush2.msra.mxu0 0.0
    %385 = vmatprep.subr.mxu0 0.0
    %386 = vmatpush2.msra.mxu0 0.0
    %387 = vmatprep.subr.mxu0 0.0
    %388 = vmatpush2.msra.mxu0 0.0
    %389 = vmatprep.subr.mxu0 0.0
    %390 = vmatpush2.msra.mxu0 0.0
    %391 = vmatprep.subr.mxu0 0.0
    %392 = vmatpush2.msra.mxu0 0.0
    %393 = vmatprep.subr.mxu0 0.0
    %394 = vmatpush2.msra.mxu0 0.0
    %395 = vmatprep.subr.mxu0 0.0
    %396 = vmatpush2.msra.mxu0 0.0
    %397 = vmatprep.subr.mxu0 0.0
    %398 = vmatpush2.msra.mxu0 0.0
    %399 = vmatprep.subr.mxu0 0.0
    %400 = vmatpush2.msra.mxu0 0.0
    %401 = vmatprep.subr.mxu0 0.0
    %402 = vmatpush2.msra.mxu0 0.0
    %403 = vmatprep.subr.mxu0 0.0
    %404 = vmatpush2.msra.mxu0 0.0
    %405 = vmatprep.mubr.f32.mxu0 0.0
    %v406 = vand.u32 %v33, 4294901760
    %v407 = vsub.f32 %v33, %v406
    %408 = vmatmul.mubr.f32.gmra.mxu0 %v407
    %v409 = vpop.f32.mrf.mxu0
    %v410 = vadd.f32 %v306, %v409
    %v411 = vpop.f32.mrf.mxu0
    %412 = vdwg.mxu0
    %413 = vmatprep.subr.mxu0 0.0
    %v414 = vand.u32 %v66, 4294901760
    %415 = vmatpush1.msra.mxu0 %v414
    %416 = vmatprep.subr.mxu0 0.0
    %v417 = vand.u32 %v65, 4294901760
    %418 = vmatpush1.msra.mxu0 %v417
    %419 = vmatprep.subr.mxu0 0.0
    %v420 = vand.u32 %v64, 4294901760
    %421 = vmatpush1.msra.mxu0 %v420
    %422 = vmatprep.subr.mxu0 0.0
    %v423 = vand.u32 %v63, 4294901760
    %424 = vmatpush1.msra.mxu0 %v423
    %425 = vmatprep.subr.mxu0 0.0
    %v426 = vand.u32 %v62, 4294901760
    %427 = vmatpush1.msra.mxu0 %v426
    %428 = vmatprep.subr.mxu0 0.0
    %v429 = vand.u32 %v61, 4294901760
    %430 = vmatpush1.msra.mxu0 %v429
    %431 = vmatprep.subr.mxu0 0.0
    %v432 = vand.u32 %v60, 4294901760
    %433 = vmatpush1.msra.mxu0 %v432
    %434 = vmatprep.subr.mxu0 0.0
    %v435 = vand.u32 %v59, 4294901760
    %436 = vmatpush1.msra.mxu0 %v435
    %437 = vmatprep.subr.mxu0 0.0
    %v438 = vand.u32 %v58, 4294901760
    %439 = vmatpush1.msra.mxu0 %v438
    %440 = vmatprep.subr.mxu0 0.0
    %v441 = vand.u32 %v57, 4294901760
    %442 = vmatpush1.msra.mxu0 %v441
    %443 = vmatprep.subr.mxu0 0.0
    %v444 = vand.u32 %v56, 4294901760
    %445 = vmatpush1.msra.mxu0 %v444
    %446 = vmatprep.subr.mxu0 0.0
    %v447 = vand.u32 %v55, 4294901760
    %448 = vmatpush1.msra.mxu0 %v447
    %449 = vmatprep.subr.mxu0 0.0
    %v450 = vand.u32 %v54, 4294901760
    %451 = vmatpush1.msra.mxu0 %v450
    %452 = vmatprep.subr.mxu0 0.0
    %v453 = vand.u32 %v53, 4294901760
    %454 = vmatpush1.msra.mxu0 %v453
    %455 = vmatprep.subr.mxu0 0.0
    %v456 = vand.u32 %v52, 4294901760
    %457 = vmatpush1.msra.mxu0 %v456
    %458 = vmatprep.subr.mxu0 0.0
    %v459 = vand.u32 %v51, 4294901760
    %460 = vmatpush1.msra.mxu0 %v459
    %461 = vmatprep.subr.mxu0 0.0
    %462 = vmatpush2.msra.mxu0 0.0
    %463 = vmatprep.subr.mxu0 0.0
    %464 = vmatpush2.msra.mxu0 0.0
    %465 = vmatprep.subr.mxu0 0.0
    %466 = vmatpush2.msra.mxu0 0.0
    %467 = vmatprep.subr.mxu0 0.0
    %468 = vmatpush2.msra.mxu0 0.0
    %469 = vmatprep.subr.mxu0 0.0
    %470 = vmatpush2.msra.mxu0 0.0
    %471 = vmatprep.subr.mxu0 0.0
    %472 = vmatpush2.msra.mxu0 0.0
    %473 = vmatprep.subr.mxu0 0.0
    %474 = vmatpush2.msra.mxu0 0.0
    %475 = vmatprep.subr.mxu0 0.0
    %476 = vmatpush2.msra.mxu0 0.0
    %477 = vmatprep.subr.mxu0 0.0
    %478 = vmatpush2.msra.mxu0 0.0
    %479 = vmatprep.subr.mxu0 0.0
    %480 = vmatpush2.msra.mxu0 0.0
    %481 = vmatprep.subr.mxu0 0.0
    %482 = vmatpush2.msra.mxu0 0.0
    %483 = vmatprep.subr.mxu0 0.0
    %484 = vmatpush2.msra.mxu0 0.0
    %485 = vmatprep.subr.mxu0 0.0
    %486 = vmatpush2.msra.mxu0 0.0
    %487 = vmatprep.subr.mxu0 0.0
    %488 = vmatpush2.msra.mxu0 0.0
    %489 = vmatprep.subr.mxu0 0.0
    %490 = vmatpush2.msra.mxu0 0.0
    %491 = vmatprep.subr.mxu0 0.0
    %492 = vmatpush2.msra.mxu0 0.0
    %493 = vmatprep.mubr.f32.mxu0 0.0
    %v494 = vand.u32 %v33, 4294901760
    %v495 = vsub.f32 %v33, %v494
    %v496 = vand.u32 %v495, 4294901760
    %497 = vmatmul.mubr.f32.gmra.mxu0 %v496
    %v498 = vpop.f32.mrf.mxu0
    %v499 = vadd.f32 %v410, %v498
    %v500 = vpop.f32.mrf.mxu0
    %501 = vdwg.mxu0
    %502 = vmatprep.subr.mxu0 0.0
    %v503 = vand.u32 %v66, 4294901760
    %v504 = vsub.f32 %v66, %v503
    %v505 = vand.u32 %v504, 4294901760
    %506 = vmatpush1.msra.mxu0 %v505
    %507 = vmatprep.subr.mxu0 0.0
    %v508 = vand.u32 %v65, 4294901760
    %v509 = vsub.f32 %v65, %v508
    %v510 = vand.u32 %v509, 4294901760
    %511 = vmatpush1.msra.mxu0 %v510
    %512 = vmatprep.subr.mxu0 0.0
    %v513 = vand.u32 %v64, 4294901760
    %v514 = vsub.f32 %v64, %v513
    %v515 = vand.u32 %v514, 4294901760
    %516 = vmatpush1.msra.mxu0 %v515
    %517 = vmatprep.subr.mxu0 0.0
    %v518 = vand.u32 %v63, 4294901760
    %v519 = vsub.f32 %v63, %v518
    %v520 = vand.u32 %v519, 4294901760
    %521 = vmatpush1.msra.mxu0 %v520
    %522 = vmatprep.subr.mxu0 0.0
    %v523 = vand.u32 %v62, 4294901760
    %v524 = vsub.f32 %v62, %v523
    %v525 = vand.u32 %v524, 4294901760
    %526 = vmatpush1.msra.mxu0 %v525
    %527 = vmatprep.subr.mxu0 0.0
    %v528 = vand.u32 %v61, 4294901760
    %v529 = vsub.f32 %v61, %v528
    %v530 = vand.u32 %v529, 4294901760
    %531 = vmatpush1.msra.mxu0 %v530
    %532 = vmatprep.subr.mxu0 0.0
    %v533 = vand.u32 %v60, 4294901760
    %v534 = vsub.f32 %v60, %v533
    %v535 = vand.u32 %v534, 4294901760
    %536 = vmatpush1.msra.mxu0 %v535
    %537 = vmatprep.subr.mxu0 0.0
    %v538 = vand.u32 %v59, 4294901760
    %v539 = vsub.f32 %v59, %v538
    %v540 = vand.u32 %v539, 4294901760
    %541 = vmatpush1.msra.mxu0 %v540
    %542 = vmatprep.subr.mxu0 0.0
    %v543 = vand.u32 %v58, 4294901760
    %v544 = vsub.f32 %v58, %v543
    %v545 = vand.u32 %v544, 4294901760
    %546 = vmatpush1.msra.mxu0 %v545
    %547 = vmatprep.subr.mxu0 0.0
    %v548 = vand.u32 %v57, 4294901760
    %v549 = vsub.f32 %v57, %v548
    %v550 = vand.u32 %v549, 4294901760
    %551 = vmatpush1.msra.mxu0 %v550
    %552 = vmatprep.subr.mxu0 0.0
    %v553 = vand.u32 %v56, 4294901760
    %v554 = vsub.f32 %v56, %v553
    %v555 = vand.u32 %v554, 4294901760
    %556 = vmatpush1.msra.mxu0 %v555
    %557 = vmatprep.subr.mxu0 0.0
    %v558 = vand.u32 %v55, 4294901760
    %v559 = vsub.f32 %v55, %v558
    %v560 = vand.u32 %v559, 4294901760
    %561 = vmatpush1.msra.mxu0 %v560
    %562 = vmatprep.subr.mxu0 0.0
    %v563 = vand.u32 %v54, 4294901760
    %v564 = vsub.f32 %v54, %v563
    %v565 = vand.u32 %v564, 4294901760
    %566 = vmatpush1.msra.mxu0 %v565
    %567 = vmatprep.subr.mxu0 0.0
    %v568 = vand.u32 %v53, 4294901760
    %v569 = vsub.f32 %v53, %v568
    %v570 = vand.u32 %v569, 4294901760
    %571 = vmatpush1.msra.mxu0 %v570
    %572 = vmatprep.subr.mxu0 0.0
    %v573 = vand.u32 %v52, 4294901760
    %v574 = vsub.f32 %v52, %v573
    %v575 = vand.u32 %v574, 4294901760
    %576 = vmatpush1.msra.mxu0 %v575
    %577 = vmatprep.subr.mxu0 0.0
    %v578 = vand.u32 %v51, 4294901760
    %v579 = vsub.f32 %v51, %v578
    %v580 = vand.u32 %v579, 4294901760
    %581 = vmatpush1.msra.mxu0 %v580
    %582 = vmatprep.subr.mxu0 0.0
    %583 = vmatpush2.msra.mxu0 0.0
    %584 = vmatprep.subr.mxu0 0.0
    %585 = vmatpush2.msra.mxu0 0.0
    %586 = vmatprep.subr.mxu0 0.0
    %587 = vmatpush2.msra.mxu0 0.0
    %588 = vmatprep.subr.mxu0 0.0
    %589 = vmatpush2.msra.mxu0 0.0
    %590 = vmatprep.subr.mxu0 0.0
    %591 = vmatpush2.msra.mxu0 0.0
    %592 = vmatprep.subr.mxu0 0.0
    %593 = vmatpush2.msra.mxu0 0.0
    %594 = vmatprep.subr.mxu0 0.0
    %595 = vmatpush2.msra.mxu0 0.0
    %596 = vmatprep.subr.mxu0 0.0
    %597 = vmatpush2.msra.mxu0 0.0
    %598 = vmatprep.subr.mxu0 0.0
    %599 = vmatpush2.msra.mxu0 0.0
    %600 = vmatprep.subr.mxu0 0.0
    %601 = vmatpush2.msra.mxu0 0.0
    %602 = vmatprep.subr.mxu0 0.0
    %603 = vmatpush2.msra.mxu0 0.0
    %604 = vmatprep.subr.mxu0 0.0
    %605 = vmatpush2.msra.mxu0 0.0
    %606 = vmatprep.subr.mxu0 0.0
    %607 = vmatpush2.msra.mxu0 0.0
    %608 = vmatprep.subr.mxu0 0.0
    %609 = vmatpush2.msra.mxu0 0.0
    %610 = vmatprep.subr.mxu0 0.0
    %611 = vmatpush2.msra.mxu0 0.0
    %612 = vmatprep.subr.mxu0 0.0
    %613 = vmatpush2.msra.mxu0 0.0
    %614 = vmatprep.mubr.f32.mxu0 0.0
    %v615 = vand.u32 %v33, 4294901760
    %616 = vmatmul.mubr.f32.gmra.mxu0 %v615
    %v617 = vpop.f32.mrf.mxu0
    %v618 = vadd.f32 %v499, %v617
    %v619 = vpop.f32.mrf.mxu0
    %620 = vdwg.mxu0
    %621 = vmatprep.subr.mxu0 0.0
    %v622 = vand.u32 %v66, 4294901760
    %623 = vmatpush1.msra.mxu0 %v622
    %624 = vmatprep.subr.mxu0 0.0
    %v625 = vand.u32 %v65, 4294901760
    %626 = vmatpush1.msra.mxu0 %v625
    %627 = vmatprep.subr.mxu0 0.0
    %v628 = vand.u32 %v64, 4294901760
    %629 = vmatpush1.msra.mxu0 %v628
    %630 = vmatprep.subr.mxu0 0.0
    %v631 = vand.u32 %v63, 4294901760
    %632 = vmatpush1.msra.mxu0 %v631
    %633 = vmatprep.subr.mxu0 0.0
    %v634 = vand.u32 %v62, 4294901760
    %635 = vmatpush1.msra.mxu0 %v634
    %636 = vmatprep.subr.mxu0 0.0
    %v637 = vand.u32 %v61, 4294901760
    %638 = vmatpush1.msra.mxu0 %v637
    %639 = vmatprep.subr.mxu0 0.0
    %v640 = vand.u32 %v60, 4294901760
    %641 = vmatpush1.msra.mxu0 %v640
    %642 = vmatprep.subr.mxu0 0.0
    %v643 = vand.u32 %v59, 4294901760
    %644 = vmatpush1.msra.mxu0 %v643
    %645 = vmatprep.subr.mxu0 0.0
    %v646 = vand.u32 %v58, 4294901760
    %647 = vmatpush1.msra.mxu0 %v646
    %648 = vmatprep.subr.mxu0 0.0
    %v649 = vand.u32 %v57, 4294901760
    %650 = vmatpush1.msra.mxu0 %v649
    %651 = vmatprep.subr.mxu0 0.0
    %v652 = vand.u32 %v56, 4294901760
    %653 = vmatpush1.msra.mxu0 %v652
    %654 = vmatprep.subr.mxu0 0.0
    %v655 = vand.u32 %v55, 4294901760
    %656 = vmatpush1.msra.mxu0 %v655
    %657 = vmatprep.subr.mxu0 0.0
    %v658 = vand.u32 %v54, 4294901760
    %659 = vmatpush1.msra.mxu0 %v658
    %660 = vmatprep.subr.mxu0 0.0
    %v661 = vand.u32 %v53, 4294901760
    %662 = vmatpush1.msra.mxu0 %v661
    %663 = vmatprep.subr.mxu0 0.0
    %v664 = vand.u32 %v52, 4294901760
    %665 = vmatpush1.msra.mxu0 %v664
    %666 = vmatprep.subr.mxu0 0.0
    %v667 = vand.u32 %v51, 4294901760
    %668 = vmatpush1.msra.mxu0 %v667
    %669 = vmatprep.subr.mxu0 0.0
    %670 = vmatpush2.msra.mxu0 0.0
    %671 = vmatprep.subr.mxu0 0.0
    %672 = vmatpush2.msra.mxu0 0.0
    %673 = vmatprep.subr.mxu0 0.0
    %674 = vmatpush2.msra.mxu0 0.0
    %675 = vmatprep.subr.mxu0 0.0
    %676 = vmatpush2.msra.mxu0 0.0
    %677 = vmatprep.subr.mxu0 0.0
    %678 = vmatpush2.msra.mxu0 0.0
    %679 = vmatprep.subr.mxu0 0.0
    %680 = vmatpush2.msra.mxu0 0.0
    %681 = vmatprep.subr.mxu0 0.0
    %682 = vmatpush2.msra.mxu0 0.0
    %683 = vmatprep.subr.mxu0 0.0
    %684 = vmatpush2.msra.mxu0 0.0
    %685 = vmatprep.subr.mxu0 0.0
    %686 = vmatpush2.msra.mxu0 0.0
    %687 = vmatprep.subr.mxu0 0.0
    %688 = vmatpush2.msra.mxu0 0.0
    %689 = vmatprep.subr.mxu0 0.0
    %690 = vmatpush2.msra.mxu0 0.0
    %691 = vmatprep.subr.mxu0 0.0
    %692 = vmatpush2.msra.mxu0 0.0
    %693 = vmatprep.subr.mxu0 0.0
    %694 = vmatpush2.msra.mxu0 0.0
    %695 = vmatprep.subr.mxu0 0.0
    %696 = vmatpush2.msra.mxu0 0.0
    %697 = vmatprep.subr.mxu0 0.0
    %698 = vmatpush2.msra.mxu0 0.0
    %699 = vmatprep.subr.mxu0 0.0
    %700 = vmatpush2.msra.mxu0 0.0
    %701 = vmatprep.mubr.f32.mxu0 0.0
    %v702 = vand.u32 %v33, 4294901760
    %703 = vmatmul.mubr.f32.gmra.mxu0 %v702
    %v704 = vpop.f32.mrf.mxu0
    %v705 = vadd.f32 %v618, %v704
    %v706 = vpop.f32.mrf.mxu0
    %707 = vdwg.mxu0
    %708 = vmatprep.subr.mxu0 0.0
    %v709 = vand.u32 %v50, 4294901760
    %710 = vmatpush1.msra.mxu0 %v709
    %711 = vmatprep.subr.mxu0 0.0
    %v712 = vand.u32 %v49, 4294901760
    %713 = vmatpush1.msra.mxu0 %v712
    %714 = vmatprep.subr.mxu0 0.0
    %v715 = vand.u32 %v48, 4294901760
    %716 = vmatpush1.msra.mxu0 %v715
    %717 = vmatprep.subr.mxu0 0.0
    %v718 = vand.u32 %v47, 4294901760
    %719 = vmatpush1.msra.mxu0 %v718
    %720 = vmatprep.subr.mxu0 0.0
    %v721 = vand.u32 %v46, 4294901760
    %722 = vmatpush1.msra.mxu0 %v721
    %723 = vmatprep.subr.mxu0 0.0
    %v724 = vand.u32 %v45, 4294901760
    %725 = vmatpush1.msra.mxu0 %v724
    %726 = vmatprep.subr.mxu0 0.0
    %v727 = vand.u32 %v44, 4294901760
    %728 = vmatpush1.msra.mxu0 %v727
    %729 = vmatprep.subr.mxu0 0.0
    %v730 = vand.u32 %v43, 4294901760
    %731 = vmatpush1.msra.mxu0 %v730
    %732 = vmatprep.subr.mxu0 0.0
    %v733 = vand.u32 %v42, 4294901760
    %734 = vmatpush1.msra.mxu0 %v733
    %735 = vmatprep.subr.mxu0 0.0
    %v736 = vand.u32 %v41, 4294901760
    %737 = vmatpush1.msra.mxu0 %v736
    %738 = vmatprep.subr.mxu0 0.0
    %v739 = vand.u32 %v40, 4294901760
    %740 = vmatpush1.msra.mxu0 %v739
    %741 = vmatprep.subr.mxu0 0.0
    %v742 = vand.u32 %v39, 4294901760
    %743 = vmatpush1.msra.mxu0 %v742
    %744 = vmatprep.subr.mxu0 0.0
    %v745 = vand.u32 %v38, 4294901760
    %746 = vmatpush1.msra.mxu0 %v745
    %747 = vmatprep.subr.mxu0 0.0
    %v748 = vand.u32 %v37, 4294901760
    %749 = vmatpush1.msra.mxu0 %v748
    %750 = vmatprep.subr.mxu0 0.0
    %v751 = vand.u32 %v36, 4294901760
    %752 = vmatpush1.msra.mxu0 %v751
    %753 = vmatprep.subr.mxu0 0.0
    %v754 = vand.u32 %v35, 4294901760
    %755 = vmatpush1.msra.mxu0 %v754
    %756 = vmatprep.subr.mxu0 0.0
    %757 = vmatpush2.msra.mxu0 0.0
    %758 = vmatprep.subr.mxu0 0.0
    %759 = vmatpush2.msra.mxu0 0.0
    %760 = vmatprep.subr.mxu0 0.0
    %761 = vmatpush2.msra.mxu0 0.0
    %762 = vmatprep.subr.mxu0 0.0
    %763 = vmatpush2.msra.mxu0 0.0
    %764 = vmatprep.subr.mxu0 0.0
    %765 = vmatpush2.msra.mxu0 0.0
    %766 = vmatprep.subr.mxu0 0.0
    %767 = vmatpush2.msra.mxu0 0.0
    %768 = vmatprep.subr.mxu0 0.0
    %769 = vmatpush2.msra.mxu0 0.0
    %770 = vmatprep.subr.mxu0 0.0
    %771 = vmatpush2.msra.mxu0 0.0
    %772 = vmatprep.subr.mxu0 0.0
    %773 = vmatpush2.msra.mxu0 0.0
    %774 = vmatprep.subr.mxu0 0.0
    %775 = vmatpush2.msra.mxu0 0.0
    %776 = vmatprep.subr.mxu0 0.0
    %777 = vmatpush2.msra.mxu0 0.0
    %778 = vmatprep.subr.mxu0 0.0
    %779 = vmatpush2.msra.mxu0 0.0
    %780 = vmatprep.subr.mxu0 0.0
    %781 = vmatpush2.msra.mxu0 0.0
    %782 = vmatprep.subr.mxu0 0.0
    %783 = vmatpush2.msra.mxu0 0.0
    %784 = vmatprep.subr.mxu0 0.0
    %785 = vmatpush2.msra.mxu0 0.0
    %786 = vmatprep.subr.mxu0 0.0
    %787 = vmatpush2.msra.mxu0 0.0
    %788 = vmatprep.mubr.f32.mxu0 0.0
    %v789 = vand.u32 %v34, 4294901760
    %v790 = vsub.f32 %v34, %v789
    %v791 = vand.u32 %v790, 4294901760
    %v792 = vsub.f32 %v790, %v791
    %v793 = vand.u32 %v792, 4294901760
    %794 = vmatmul.mubr.f32.gmra.mxu0 %v793
    %v795 = vpop.f32.mrf.mxu0
    %v796 = vadd.f32 %v705, %v795
    %v797 = vpop.f32.mrf.mxu0
    %798 = vdwg.mxu0
    %799 = vmatprep.subr.mxu0 0.0
    %v800 = vand.u32 %v50, 4294901760
    %v801 = vsub.f32 %v50, %v800
    %v802 = vand.u32 %v801, 4294901760
    %v803 = vsub.f32 %v801, %v802
    %v804 = vand.u32 %v803, 4294901760
    %805 = vmatpush1.msra.mxu0 %v804
    %806 = vmatprep.subr.mxu0 0.0
    %v807 = vand.u32 %v49, 4294901760
    %v808 = vsub.f32 %v49, %v807
    %v809 = vand.u32 %v808, 4294901760
    %v810 = vsub.f32 %v808, %v809
    %v811 = vand.u32 %v810, 4294901760
    %812 = vmatpush1.msra.mxu0 %v811
    %813 = vmatprep.subr.mxu0 0.0
    %v814 = vand.u32 %v48, 4294901760
    %v815 = vsub.f32 %v48, %v814
    %v816 = vand.u32 %v815, 4294901760
    %v817 = vsub.f32 %v815, %v816
    %v818 = vand.u32 %v817, 4294901760
    %819 = vmatpush1.msra.mxu0 %v818
    %820 = vmatprep.subr.mxu0 0.0
    %v821 = vand.u32 %v47, 4294901760
    %v822 = vsub.f32 %v47, %v821
    %v823 = vand.u32 %v822, 4294901760
    %v824 = vsub.f32 %v822, %v823
    %v825 = vand.u32 %v824, 4294901760
    %826 = vmatpush1.msra.mxu0 %v825
    %827 = vmatprep.subr.mxu0 0.0
    %v828 = vand.u32 %v46, 4294901760
    %v829 = vsub.f32 %v46, %v828
    %v830 = vand.u32 %v829, 4294901760
    %v831 = vsub.f32 %v829, %v830
    %v832 = vand.u32 %v831, 4294901760
    %833 = vmatpush1.msra.mxu0 %v832
    %834 = vmatprep.subr.mxu0 0.0
    %v835 = vand.u32 %v45, 4294901760
    %v836 = vsub.f32 %v45, %v835
    %v837 = vand.u32 %v836, 4294901760
    %v838 = vsub.f32 %v836, %v837
    %v839 = vand.u32 %v838, 4294901760
    %840 = vmatpush1.msra.mxu0 %v839
    %841 = vmatprep.subr.mxu0 0.0
    %v842 = vand.u32 %v44, 4294901760
    %v843 = vsub.f32 %v44, %v842
    %v844 = vand.u32 %v843, 4294901760
    %v845 = vsub.f32 %v843, %v844
    %v846 = vand.u32 %v845, 4294901760
    %847 = vmatpush1.msra.mxu0 %v846
    %848 = vmatprep.subr.mxu0 0.0
    %v849 = vand.u32 %v43, 4294901760
    %v850 = vsub.f32 %v43, %v849
    %v851 = vand.u32 %v850, 4294901760
    %v852 = vsub.f32 %v850, %v851
    %v853 = vand.u32 %v852, 4294901760
    %854 = vmatpush1.msra.mxu0 %v853
    %855 = vmatprep.subr.mxu0 0.0
    %v856 = vand.u32 %v42, 4294901760
    %v857 = vsub.f32 %v42, %v856
    %v858 = vand.u32 %v857, 4294901760
    %v859 = vsub.f32 %v857, %v858
    %v860 = vand.u32 %v859, 4294901760
    %861 = vmatpush1.msra.mxu0 %v860
    %862 = vmatprep.subr.mxu0 0.0
    %v863 = vand.u32 %v41, 4294901760
    %v864 = vsub.f32 %v41, %v863
    %v865 = vand.u32 %v864, 4294901760
    %v866 = vsub.f32 %v864, %v865
    %v867 = vand.u32 %v866, 4294901760
    %868 = vmatpush1.msra.mxu0 %v867
    %869 = vmatprep.subr.mxu0 0.0
    %v870 = vand.u32 %v40, 4294901760
    %v871 = vsub.f32 %v40, %v870
    %v872 = vand.u32 %v871, 4294901760
    %v873 = vsub.f32 %v871, %v872
    %v874 = vand.u32 %v873, 4294901760
    %875 = vmatpush1.msra.mxu0 %v874
    %876 = vmatprep.subr.mxu0 0.0
    %v877 = vand.u32 %v39, 4294901760
    %v878 = vsub.f32 %v39, %v877
    %v879 = vand.u32 %v878, 4294901760
    %v880 = vsub.f32 %v878, %v879
    %v881 = vand.u32 %v880, 4294901760
    %882 = vmatpush1.msra.mxu0 %v881
    %883 = vmatprep.subr.mxu0 0.0
    %v884 = vand.u32 %v38, 4294901760
    %v885 = vsub.f32 %v38, %v884
    %v886 = vand.u32 %v885, 4294901760
    %v887 = vsub.f32 %v885, %v886
    %v888 = vand.u32 %v887, 4294901760
    %889 = vmatpush1.msra.mxu0 %v888
    %890 = vmatprep.subr.mxu0 0.0
    %v891 = vand.u32 %v37, 4294901760
    %v892 = vsub.f32 %v37, %v891
    %v893 = vand.u32 %v892, 4294901760
    %v894 = vsub.f32 %v892, %v893
    %v895 = vand.u32 %v894, 4294901760
    %896 = vmatpush1.msra.mxu0 %v895
    %897 = vmatprep.subr.mxu0 0.0
    %v898 = vand.u32 %v36, 4294901760
    %v899 = vsub.f32 %v36, %v898
    %v900 = vand.u32 %v899, 4294901760
    %v901 = vsub.f32 %v899, %v900
    %v902 = vand.u32 %v901, 4294901760
    %903 = vmatpush1.msra.mxu0 %v902
    %904 = vmatprep.subr.mxu0 0.0
    %v905 = vand.u32 %v35, 4294901760
    %v906 = vsub.f32 %v35, %v905
    %v907 = vand.u32 %v906, 4294901760
    %v908 = vsub.f32 %v906, %v907
    %v909 = vand.u32 %v908, 4294901760
    %910 = vmatpush1.msra.mxu0 %v909
    %911 = vmatprep.subr.mxu0 0.0
    %912 = vmatpush2.msra.mxu0 0.0
    %913 = vmatprep.subr.mxu0 0.0
    %914 = vmatpush2.msra.mxu0 0.0
    %915 = vmatprep.subr.mxu0 0.0
    %916 = vmatpush2.msra.mxu0 0.0
    %917 = vmatprep.subr.mxu0 0.0
    %918 = vmatpush2.msra.mxu0 0.0
    %919 = vmatprep.subr.mxu0 0.0
    %920 = vmatpush2.msra.mxu0 0.0
    %921 = vmatprep.subr.mxu0 0.0
    %922 = vmatpush2.msra.mxu0 0.0
    %923 = vmatprep.subr.mxu0 0.0
    %924 = vmatpush2.msra.mxu0 0.0
    %925 = vmatprep.subr.mxu0 0.0
    %926 = vmatpush2.msra.mxu0 0.0
    %927 = vmatprep.subr.mxu0 0.0
    %928 = vmatpush2.msra.mxu0 0.0
    %929 = vmatprep.subr.mxu0 0.0
    %930 = vmatpush2.msra.mxu0 0.0
    %931 = vmatprep.subr.mxu0 0.0
    %932 = vmatpush2.msra.mxu0 0.0
    %933 = vmatprep.subr.mxu0 0.0
    %934 = vmatpush2.msra.mxu0 0.0
    %935 = vmatprep.subr.mxu0 0.0
    %936 = vmatpush2.msra.mxu0 0.0
    %937 = vmatprep.subr.mxu0 0.0
    %938 = vmatpush2.msra.mxu0 0.0
    %939 = vmatprep.subr.mxu0 0.0
    %940 = vmatpush2.msra.mxu0 0.0
    %941 = vmatprep.subr.mxu0 0.0
    %942 = vmatpush2.msra.mxu0 0.0
    %943 = vmatprep.mubr.f32.mxu0 0.0
    %v944 = vand.u32 %v34, 4294901760
    %945 = vmatmul.mubr.f32.gmra.mxu0 %v944
    %v946 = vpop.f32.mrf.mxu0
    %v947 = vadd.f32 %v796, %v946
    %v948 = vpop.f32.mrf.mxu0
    %949 = vdwg.mxu0
    %950 = vmatprep.subr.mxu0 0.0
    %v951 = vand.u32 %v50, 4294901760
    %v952 = vsub.f32 %v50, %v951
    %953 = vmatpush1.msra.mxu0 %v952
    %954 = vmatprep.subr.mxu0 0.0
    %v955 = vand.u32 %v49, 4294901760
    %v956 = vsub.f32 %v49, %v955
    %957 = vmatpush1.msra.mxu0 %v956
    %958 = vmatprep.subr.mxu0 0.0
    %v959 = vand.u32 %v48, 4294901760
    %v960 = vsub.f32 %v48, %v959
    %961 = vmatpush1.msra.mxu0 %v960
    %962 = vmatprep.subr.mxu0 0.0
    %v963 = vand.u32 %v47, 4294901760
    %v964 = vsub.f32 %v47, %v963
    %965 = vmatpush1.msra.mxu0 %v964
    %966 = vmatprep.subr.mxu0 0.0
    %v967 = vand.u32 %v46, 4294901760
    %v968 = vsub.f32 %v46, %v967
    %969 = vmatpush1.msra.mxu0 %v968
    %970 = vmatprep.subr.mxu0 0.0
    %v971 = vand.u32 %v45, 4294901760
    %v972 = vsub.f32 %v45, %v971
    %973 = vmatpush1.msra.mxu0 %v972
    %974 = vmatprep.subr.mxu0 0.0
    %v975 = vand.u32 %v44, 4294901760
    %v976 = vsub.f32 %v44, %v975
    %977 = vmatpush1.msra.mxu0 %v976
    %978 = vmatprep.subr.mxu0 0.0
    %v979 = vand.u32 %v43, 4294901760
    %v980 = vsub.f32 %v43, %v979
    %981 = vmatpush1.msra.mxu0 %v980
    %982 = vmatprep.subr.mxu0 0.0
    %v983 = vand.u32 %v42, 4294901760
    %v984 = vsub.f32 %v42, %v983
    %985 = vmatpush1.msra.mxu0 %v984
    %986 = vmatprep.subr.mxu0 0.0
    %v987 = vand.u32 %v41, 4294901760
    %v988 = vsub.f32 %v41, %v987
    %989 = vmatpush1.msra.mxu0 %v988
    %990 = vmatprep.subr.mxu0 0.0
    %v991 = vand.u32 %v40, 4294901760
    %v992 = vsub.f32 %v40, %v991
    %993 = vmatpush1.msra.mxu0 %v992
    %994 = vmatprep.subr.mxu0 0.0
    %v995 = vand.u32 %v39, 4294901760
    %v996 = vsub.f32 %v39, %v995
    %997 = vmatpush1.msra.mxu0 %v996
    %998 = vmatprep.subr.mxu0 0.0
    %v999 = vand.u32 %v38, 4294901760
    %v1000 = vsub.f32 %v38, %v999
    %1001 = vmatpush1.msra.mxu0 %v1000
    %1002 = vmatprep.subr.mxu0 0.0
    %v1003 = vand.u32 %v37, 4294901760
    %v1004 = vsub.f32 %v37, %v1003
    %1005 = vmatpush1.msra.mxu0 %v1004
    %1006 = vmatprep.subr.mxu0 0.0
    %v1007 = vand.u32 %v36, 4294901760
    %v1008 = vsub.f32 %v36, %v1007
    %1009 = vmatpush1.msra.mxu0 %v1008
    %1010 = vmatprep.subr.mxu0 0.0
    %v1011 = vand.u32 %v35, 4294901760
    %v1012 = vsub.f32 %v35, %v1011
    %1013 = vmatpush1.msra.mxu0 %v1012
    %1014 = vmatprep.subr.mxu0 0.0
    %1015 = vmatpush2.msra.mxu0 0.0
    %1016 = vmatprep.subr.mxu0 0.0
    %1017 = vmatpush2.msra.mxu0 0.0
    %1018 = vmatprep.subr.mxu0 0.0
    %1019 = vmatpush2.msra.mxu0 0.0
    %1020 = vmatprep.subr.mxu0 0.0
    %1021 = vmatpush2.msra.mxu0 0.0
    %1022 = vmatprep.subr.mxu0 0.0
    %1023 = vmatpush2.msra.mxu0 0.0
    %1024 = vmatprep.subr.mxu0 0.0
    %1025 = vmatpush2.msra.mxu0 0.0
    %1026 = vmatprep.subr.mxu0 0.0
    %1027 = vmatpush2.msra.mxu0 0.0
    %1028 = vmatprep.subr.mxu0 0.0
    %1029 = vmatpush2.msra.mxu0 0.0
    %1030 = vmatprep.subr.mxu0 0.0
    %1031 = vmatpush2.msra.mxu0 0.0
    %1032 = vmatprep.subr.mxu0 0.0
    %1033 = vmatpush2.msra.mxu0 0.0
    %1034 = vmatprep.subr.mxu0 0.0
    %1035 = vmatpush2.msra.mxu0 0.0
    %1036 = vmatprep.subr.mxu0 0.0
    %1037 = vmatpush2.msra.mxu0 0.0
    %1038 = vmatprep.subr.mxu0 0.0
    %1039 = vmatpush2.msra.mxu0 0.0
    %1040 = vmatprep.subr.mxu0 0.0
    %1041 = vmatpush2.msra.mxu0 0.0
    %1042 = vmatprep.subr.mxu0 0.0
    %1043 = vmatpush2.msra.mxu0 0.0
    %1044 = vmatprep.subr.mxu0 0.0
    %1045 = vmatpush2.msra.mxu0 0.0
    %1046 = vmatprep.mubr.f32.mxu0 0.0
    %v1047 = vand.u32 %v34, 4294901760
    %v1048 = vsub.f32 %v34, %v1047
    %1049 = vmatmul.mubr.f32.gmra.mxu0 %v1048
    %v1050 = vpop.f32.mrf.mxu0
    %v1051 = vadd.f32 %v947, %v1050
    %v1052 = vpop.f32.mrf.mxu0
    %1053 = vdwg.mxu0
    %1054 = vmatprep.subr.mxu0 0.0
    %v1055 = vand.u32 %v50, 4294901760
    %1056 = vmatpush1.msra.mxu0 %v1055
    %1057 = vmatprep.subr.mxu0 0.0
    %v1058 = vand.u32 %v49, 4294901760
    %1059 = vmatpush1.msra.mxu0 %v1058
    %1060 = vmatprep.subr.mxu0 0.0
    %v1061 = vand.u32 %v48, 4294901760
    %1062 = vmatpush1.msra.mxu0 %v1061
    %1063 = vmatprep.subr.mxu0 0.0
    %v1064 = vand.u32 %v47, 4294901760
    %1065 = vmatpush1.msra.mxu0 %v1064
    %1066 = vmatprep.subr.mxu0 0.0
    %v1067 = vand.u32 %v46, 4294901760
    %1068 = vmatpush1.msra.mxu0 %v1067
    %1069 = vmatprep.subr.mxu0 0.0
    %v1070 = vand.u32 %v45, 4294901760
    %1071 = vmatpush1.msra.mxu0 %v1070
    %1072 = vmatprep.subr.mxu0 0.0
    %v1073 = vand.u32 %v44, 4294901760
    %1074 = vmatpush1.msra.mxu0 %v1073
    %1075 = vmatprep.subr.mxu0 0.0
    %v1076 = vand.u32 %v43, 4294901760
    %1077 = vmatpush1.msra.mxu0 %v1076
    %1078 = vmatprep.subr.mxu0 0.0
    %v1079 = vand.u32 %v42, 4294901760
    %1080 = vmatpush1.msra.mxu0 %v1079
    %1081 = vmatprep.subr.mxu0 0.0
    %v1082 = vand.u32 %v41, 4294901760
    %1083 = vmatpush1.msra.mxu0 %v1082
    %1084 = vmatprep.subr.mxu0 0.0
    %v1085 = vand.u32 %v40, 4294901760
    %1086 = vmatpush1.msra.mxu0 %v1085
    %1087 = vmatprep.subr.mxu0 0.0
    %v1088 = vand.u32 %v39, 4294901760
    %1089 = vmatpush1.msra.mxu0 %v1088
    %1090 = vmatprep.subr.mxu0 0.0
    %v1091 = vand.u32 %v38, 4294901760
    %1092 = vmatpush1.msra.mxu0 %v1091
    %1093 = vmatprep.subr.mxu0 0.0
    %v1094 = vand.u32 %v37, 4294901760
    %1095 = vmatpush1.msra.mxu0 %v1094
    %1096 = vmatprep.subr.mxu0 0.0
    %v1097 = vand.u32 %v36, 4294901760
    %1098 = vmatpush1.msra.mxu0 %v1097
    %1099 = vmatprep.subr.mxu0 0.0
    %v1100 = vand.u32 %v35, 4294901760
    %1101 = vmatpush1.msra.mxu0 %v1100
    %1102 = vmatprep.subr.mxu0 0.0
    %1103 = vmatpush2.msra.mxu0 0.0
    %1104 = vmatprep.subr.mxu0 0.0
    %1105 = vmatpush2.msra.mxu0 0.0
    %1106 = vmatprep.subr.mxu0 0.0
    %1107 = vmatpush2.msra.mxu0 0.0
    %1108 = vmatprep.subr.mxu0 0.0
    %1109 = vmatpush2.msra.mxu0 0.0
    %1110 = vmatprep.subr.mxu0 0.0
    %1111 = vmatpush2.msra.mxu0 0.0
    %1112 = vmatprep.subr.mxu0 0.0
    %1113 = vmatpush2.msra.mxu0 0.0
    %1114 = vmatprep.subr.mxu0 0.0
    %1115 = vmatpush2.msra.mxu0 0.0
    %1116 = vmatprep.subr.mxu0 0.0
    %1117 = vmatpush2.msra.mxu0 0.0
    %1118 = vmatprep.subr.mxu0 0.0
    %1119 = vmatpush2.msra.mxu0 0.0
    %1120 = vmatprep.subr.mxu0 0.0
    %1121 = vmatpush2.msra.mxu0 0.0
    %1122 = vmatprep.subr.mxu0 0.0
    %1123 = vmatpush2.msra.mxu0 0.0
    %1124 = vmatprep.subr.mxu0 0.0
    %1125 = vmatpush2.msra.mxu0 0.0
    %1126 = vmatprep.subr.mxu0 0.0
    %1127 = vmatpush2.msra.mxu0 0.0
    %1128 = vmatprep.subr.mxu0 0.0
    %1129 = vmatpush2.msra.mxu0 0.0
    %1130 = vmatprep.subr.mxu0 0.0
    %1131 = vmatpush2.msra.mxu0 0.0
    %1132 = vmatprep.subr.mxu0 0.0
    %1133 = vmatpush2.msra.mxu0 0.0
    %1134 = vmatprep.mubr.f32.mxu0 0.0
    %v1135 = vand.u32 %v34, 4294901760
    %v1136 = vsub.f32 %v34, %v1135
    %v1137 = vand.u32 %v1136, 4294901760
    %1138 = vmatmul.mubr.f32.gmra.mxu0 %v1137
    %v1139 = vpop.f32.mrf.mxu0
    %v1140 = vadd.f32 %v1051, %v1139
    %v1141 = vpop.f32.mrf.mxu0
    %1142 = vdwg.mxu0
    %1143 = vmatprep.subr.mxu0 0.0
    %v1144 = vand.u32 %v50, 4294901760
    %v1145 = vsub.f32 %v50, %v1144
    %v1146 = vand.u32 %v1145, 4294901760
    %1147 = vmatpush1.msra.mxu0 %v1146
    %1148 = vmatprep.subr.mxu0 0.0
    %v1149 = vand.u32 %v49, 4294901760
    %v1150 = vsub.f32 %v49, %v1149
    %v1151 = vand.u32 %v1150, 4294901760
    %1152 = vmatpush1.msra.mxu0 %v1151
    %1153 = vmatprep.subr.mxu0 0.0
    %v1154 = vand.u32 %v48, 4294901760
    %v1155 = vsub.f32 %v48, %v1154
    %v1156 = vand.u32 %v1155, 4294901760
    %1157 = vmatpush1.msra.mxu0 %v1156
    %1158 = vmatprep.subr.mxu0 0.0
    %v1159 = vand.u32 %v47, 4294901760
    %v1160 = vsub.f32 %v47, %v1159
    %v1161 = vand.u32 %v1160, 4294901760
    %1162 = vmatpush1.msra.mxu0 %v1161
    %1163 = vmatprep.subr.mxu0 0.0
    %v1164 = vand.u32 %v46, 4294901760
    %v1165 = vsub.f32 %v46, %v1164
    %v1166 = vand.u32 %v1165, 4294901760
    %1167 = vmatpush1.msra.mxu0 %v1166
    %1168 = vmatprep.subr.mxu0 0.0
    %v1169 = vand.u32 %v45, 4294901760
    %v1170 = vsub.f32 %v45, %v1169
    %v1171 = vand.u32 %v1170, 4294901760
    %1172 = vmatpush1.msra.mxu0 %v1171
    %1173 = vmatprep.subr.mxu0 0.0
    %v1174 = vand.u32 %v44, 4294901760
    %v1175 = vsub.f32 %v44, %v1174
    %v1176 = vand.u32 %v1175, 4294901760
    %1177 = vmatpush1.msra.mxu0 %v1176
    %1178 = vmatprep.subr.mxu0 0.0
    %v1179 = vand.u32 %v43, 4294901760
    %v1180 = vsub.f32 %v43, %v1179
    %v1181 = vand.u32 %v1180, 4294901760
    %1182 = vmatpush1.msra.mxu0 %v1181
    %1183 = vmatprep.subr.mxu0 0.0
    %v1184 = vand.u32 %v42, 4294901760
    %v1185 = vsub.f32 %v42, %v1184
    %v1186 = vand.u32 %v1185, 4294901760
    %1187 = vmatpush1.msra.mxu0 %v1186
    %1188 = vmatprep.subr.mxu0 0.0
    %v1189 = vand.u32 %v41, 4294901760
    %v1190 = vsub.f32 %v41, %v1189
    %v1191 = vand.u32 %v1190, 4294901760
    %1192 = vmatpush1.msra.mxu0 %v1191
    %1193 = vmatprep.subr.mxu0 0.0
    %v1194 = vand.u32 %v40, 4294901760
    %v1195 = vsub.f32 %v40, %v1194
    %v1196 = vand.u32 %v1195, 4294901760
    %1197 = vmatpush1.msra.mxu0 %v1196
    %1198 = vmatprep.subr.mxu0 0.0
    %v1199 = vand.u32 %v39, 4294901760
    %v1200 = vsub.f32 %v39, %v1199
    %v1201 = vand.u32 %v1200, 4294901760
    %1202 = vmatpush1.msra.mxu0 %v1201
    %1203 = vmatprep.subr.mxu0 0.0
    %v1204 = vand.u32 %v38, 4294901760
    %v1205 = vsub.f32 %v38, %v1204
    %v1206 = vand.u32 %v1205, 4294901760
    %1207 = vmatpush1.msra.mxu0 %v1206
    %1208 = vmatprep.subr.mxu0 0.0
    %v1209 = vand.u32 %v37, 4294901760
    %v1210 = vsub.f32 %v37, %v1209
    %v1211 = vand.u32 %v1210, 4294901760
    %1212 = vmatpush1.msra.mxu0 %v1211
    %1213 = vmatprep.subr.mxu0 0.0
    %v1214 = vand.u32 %v36, 4294901760
    %v1215 = vsub.f32 %v36, %v1214
    %v1216 = vand.u32 %v1215, 4294901760
    %1217 = vmatpush1.msra.mxu0 %v1216
    %1218 = vmatprep.subr.mxu0 0.0
    %v1219 = vand.u32 %v35, 4294901760
    %v1220 = vsub.f32 %v35, %v1219
    %v1221 = vand.u32 %v1220, 4294901760
    %1222 = vmatpush1.msra.mxu0 %v1221
    %1223 = vmatprep.subr.mxu0 0.0
    %1224 = vmatpush2.msra.mxu0 0.0
    %1225 = vmatprep.subr.mxu0 0.0
    %1226 = vmatpush2.msra.mxu0 0.0
    %1227 = vmatprep.subr.mxu0 0.0
    %1228 = vmatpush2.msra.mxu0 0.0
    %1229 = vmatprep.subr.mxu0 0.0
    %1230 = vmatpush2.msra.mxu0 0.0
    %1231 = vmatprep.subr.mxu0 0.0
    %1232 = vmatpush2.msra.mxu0 0.0
    %1233 = vmatprep.subr.mxu0 0.0
    %1234 = vmatpush2.msra.mxu0 0.0
    %1235 = vmatprep.subr.mxu0 0.0
    %1236 = vmatpush2.msra.mxu0 0.0
    %1237 = vmatprep.subr.mxu0 0.0
    %1238 = vmatpush2.msra.mxu0 0.0
    %1239 = vmatprep.subr.mxu0 0.0
    %1240 = vmatpush2.msra.mxu0 0.0
    %1241 = vmatprep.subr.mxu0 0.0
    %1242 = vmatpush2.msra.mxu0 0.0
    %1243 = vmatprep.subr.mxu0 0.0
    %1244 = vmatpush2.msra.mxu0 0.0
    %1245 = vmatprep.subr.mxu0 0.0
    %1246 = vmatpush2.msra.mxu0 0.0
    %1247 = vmatprep.subr.mxu0 0.0
    %1248 = vmatpush2.msra.mxu0 0.0
    %1249 = vmatprep.subr.mxu0 0.0
    %1250 = vmatpush2.msra.mxu0 0.0
    %1251 = vmatprep.subr.mxu0 0.0
    %1252 = vmatpush2.msra.mxu0 0.0
    %1253 = vmatprep.subr.mxu0 0.0
    %1254 = vmatpush2.msra.mxu0 0.0
    %1255 = vmatprep.mubr.f32.mxu0 0.0
    %v1256 = vand.u32 %v34, 4294901760
    %1257 = vmatmul.mubr.f32.gmra.mxu0 %v1256
    %v1258 = vpop.f32.mrf.mxu0
    %v1259 = vadd.f32 %v1140, %v1258
    %v1260 = vpop.f32.mrf.mxu0
    %1261 = vdwg.mxu0
    %1262 = vmatprep.subr.mxu0 0.0
    %v1263 = vand.u32 %v50, 4294901760
    %1264 = vmatpush1.msra.mxu0 %v1263
    %1265 = vmatprep.subr.mxu0 0.0
    %v1266 = vand.u32 %v49, 4294901760
    %1267 = vmatpush1.msra.mxu0 %v1266
    %1268 = vmatprep.subr.mxu0 0.0
    %v1269 = vand.u32 %v48, 4294901760
    %1270 = vmatpush1.msra.mxu0 %v1269
    %1271 = vmatprep.subr.mxu0 0.0
    %v1272 = vand.u32 %v47, 4294901760
    %1273 = vmatpush1.msra.mxu0 %v1272
    %1274 = vmatprep.subr.mxu0 0.0
    %v1275 = vand.u32 %v46, 4294901760
    %1276 = vmatpush1.msra.mxu0 %v1275
    %1277 = vmatprep.subr.mxu0 0.0
    %v1278 = vand.u32 %v45, 4294901760
    %1279 = vmatpush1.msra.mxu0 %v1278
    %1280 = vmatprep.subr.mxu0 0.0
    %v1281 = vand.u32 %v44, 4294901760
    %1282 = vmatpush1.msra.mxu0 %v1281
    %1283 = vmatprep.subr.mxu0 0.0
    %v1284 = vand.u32 %v43, 4294901760
    %1285 = vmatpush1.msra.mxu0 %v1284
    %1286 = vmatprep.subr.mxu0 0.0
    %v1287 = vand.u32 %v42, 4294901760
    %1288 = vmatpush1.msra.mxu0 %v1287
    %1289 = vmatprep.subr.mxu0 0.0
    %v1290 = vand.u32 %v41, 4294901760
    %1291 = vmatpush1.msra.mxu0 %v1290
    %1292 = vmatprep.subr.mxu0 0.0
    %v1293 = vand.u32 %v40, 4294901760
    %1294 = vmatpush1.msra.mxu0 %v1293
    %1295 = vmatprep.subr.mxu0 0.0
    %v1296 = vand.u32 %v39, 4294901760
    %1297 = vmatpush1.msra.mxu0 %v1296
    %1298 = vmatprep.subr.mxu0 0.0
    %v1299 = vand.u32 %v38, 4294901760
    %1300 = vmatpush1.msra.mxu0 %v1299
    %1301 = vmatprep.subr.mxu0 0.0
    %v1302 = vand.u32 %v37, 4294901760
    %1303 = vmatpush1.msra.mxu0 %v1302
    %1304 = vmatprep.subr.mxu0 0.0
    %v1305 = vand.u32 %v36, 4294901760
    %1306 = vmatpush1.msra.mxu0 %v1305
    %1307 = vmatprep.subr.mxu0 0.0
    %v1308 = vand.u32 %v35, 4294901760
    %1309 = vmatpush1.msra.mxu0 %v1308
    %1310 = vmatprep.subr.mxu0 0.0
    %1311 = vmatpush2.msra.mxu0 0.0
    %1312 = vmatprep.subr.mxu0 0.0
    %1313 = vmatpush2.msra.mxu0 0.0
    %1314 = vmatprep.subr.mxu0 0.0
    %1315 = vmatpush2.msra.mxu0 0.0
    %1316 = vmatprep.subr.mxu0 0.0
    %1317 = vmatpush2.msra.mxu0 0.0
    %1318 = vmatprep.subr.mxu0 0.0
    %1319 = vmatpush2.msra.mxu0 0.0
    %1320 = vmatprep.subr.mxu0 0.0
    %1321 = vmatpush2.msra.mxu0 0.0
    %1322 = vmatprep.subr.mxu0 0.0
    %1323 = vmatpush2.msra.mxu0 0.0
    %1324 = vmatprep.subr.mxu0 0.0
    %1325 = vmatpush2.msra.mxu0 0.0
    %1326 = vmatprep.subr.mxu0 0.0
    %1327 = vmatpush2.msra.mxu0 0.0
    %1328 = vmatprep.subr.mxu0 0.0
    %1329 = vmatpush2.msra.mxu0 0.0
    %1330 = vmatprep.subr.mxu0 0.0
    %1331 = vmatpush2.msra.mxu0 0.0
    %1332 = vmatprep.subr.mxu0 0.0
    %1333 = vmatpush2.msra.mxu0 0.0
    %1334 = vmatprep.subr.mxu0 0.0
    %1335 = vmatpush2.msra.mxu0 0.0
    %1336 = vmatprep.subr.mxu0 0.0
    %1337 = vmatpush2.msra.mxu0 0.0
    %1338 = vmatprep.subr.mxu0 0.0
    %1339 = vmatpush2.msra.mxu0 0.0
    %1340 = vmatprep.subr.mxu0 0.0
    %1341 = vmatpush2.msra.mxu0 0.0
    %1342 = vmatprep.mubr.f32.mxu0 0.0
    %v1343 = vand.u32 %v34, 4294901760
    %1344 = vmatmul.mubr.f32.gmra.mxu0 %v1343
    %v1345 = vpop.f32.mrf.mxu0
    %v1346 = vadd.f32 %v1259, %v1345
    %v1347 = vpop.f32.mrf.mxu0
    %1348 = vdwg.mxu0
    %v1349 = vld [vmem:[%s5] sm:$0x1]
    %v1351 = vlaneseq
    %v1352 = vshrl.u32 %v1351, 7
    %v1353 = vsub.s32 0, %v1352
    %v1354 = vrot.slane %v1349, %v1353
    %v1356 = vadd.f32 %v1346, %v1354
    %vm1357 = vcmask 19456
    %v1358 = vsel %vm1357, %v1356, -inf
    %1359 = vmax.xlane.f32.xlu0 %v1358
    %v1360 = vpop.xlane.xlu0 %1359
    %v1361 = vsub.f32 %v1356, %v1360
    %v1362 = vmul.f32 %v1361, 1.442695
    %v1363 = vpow.pop %v1362
    %v1364 = vsel %vm1357, %v1363, 0.0
    %1365 = vadd.xlane.f32.xlu0 %v1364
    %v1366 = vpop.xlane.xlu0 %1365
    %v1367 = vrcp.pop %v1366
    %v1368 = vmul.f32 %v1363, %v1367
    %vm1369 = vcmask 44056
    %v1370 = vsel %vm1369, %v1356, -inf
    %1371 = vmax.xlane.f32.xlu0 %v1370
    %v1372 = vpop.xlane.xlu0 %1371
    %v1373 = vsub.f32 %v1356, %v1372
    %v1374 = vmul.f32 %v1373, 1.442695
    %v1375 = vpow.pop %v1374
    %1377 = vrot.lane.b32.xlu0 %v1375, 125
    %v1378 = vpop.permute.xlu0 %1377
    %v1380 = vsel %vm1357, %v1378, 0.0
    %1381 = vadd.xlane.f32.xlu0 %v1380
    %v1382 = vpop.xlane.xlu0 %1381
    %v1383 = vrcp.pop %v1382
    %v1384 = vmul.f32 %v1375, %v1383
    %vm1385 = vcmask 68656
    %v1386 = vsel %vm1385, %v1356, -inf
    %1387 = vmax.xlane.f32.xlu0 %v1386
    %v1388 = vpop.xlane.xlu0 %1387
    %v1389 = vsub.f32 %v1356, %v1388
    %v1390 = vmul.f32 %v1389, 1.442695
    %v1391 = vpow.pop %v1390
    %1393 = vrot.lane.b32.xlu0 %v1391, 122
    %v1394 = vpop.permute.xlu0 %1393
    %v1396 = vsel %vm1357, %v1394, 0.0
    %1397 = vadd.xlane.f32.xlu0 %v1396
    %v1398 = vpop.xlane.xlu0 %1397
    %v1399 = vrcp.pop %v1398
    %v1400 = vmul.f32 %v1391, %v1399
    %vm1401 = vcmask 93256
    %v1402 = vsel %vm1401, %v1356, -inf
    %1403 = vmax.xlane.f32.xlu0 %v1402
    %v1404 = vpop.xlane.xlu0 %1403
    %v1405 = vsub.f32 %v1356, %v1404
    %v1406 = vmul.f32 %v1405, 1.442695
    %v1407 = vpow.pop %v1406
    %1409 = vrot.lane.b32.xlu0 %v1407, 119
    %v1410 = vpop.permute.xlu0 %1409
    %v1412 = vsel %vm1357, %v1410, 0.0
    %1413 = vadd.xlane.f32.xlu0 %v1412
    %v1414 = vpop.xlane.xlu0 %1413
    %v1415 = vrcp.pop %v1414
    %v1416 = vmul.f32 %v1407, %v1415
    %vm1417 = vcmask 23552
    %v1418 = vsel %vm1417, %v1368, %v1384
    %vm1419 = vcmask 48128
    %v1420 = vsel %vm1419, %v1418, %v1400
    %vm1421 = vcmask 72704
    %v1422 = vsel %vm1421, %v1420, %v1416
    %v1423 = vld [vmem:[%s6] sm:$0x1]
    %v1425 = vlaneseq
    %v1426 = vshrl.u32 %v1425, 7
    %v1427 = vsub.s32 0, %v1426
    %v1428 = vrot.slane %v1423, %v1427
    %v1430 = vmul.f32 %v1422, %v1428
    %v1431 = vld [vmem:[%s3] sm:$0xff]
    %v1432 = vld [vmem:[%s3 + $0x8] sm:$0xf]
    %vm1433 = vcmask 97280
    %v1435 = vsel %vm1433, %v1430, 0
    %vm1437 = vcmask 1043456
    %v1439 = vsel %vm1437, %v1432, 0
    %1441 = vmatprep.subr.mxu0 0.0
    %1442 = vmatpush1.msra.mxu0 0.0
    %1443 = vmatprep.subr.mxu0 0.0
    %1444 = vmatpush1.msra.mxu0 0.0
    %1445 = vmatprep.subr.mxu0 0.0
    %1446 = vmatpush1.msra.mxu0 0.0
    %1447 = vmatprep.subr.mxu0 0.0
    %1448 = vmatpush1.msra.mxu0 0.0
    %1449 = vmatprep.subr.mxu0 0.0
    %1450 = vmatpush1.msra.mxu0 0.0
    %1451 = vmatprep.subr.mxu0 0.0
    %1452 = vmatpush1.msra.mxu0 0.0
    %1453 = vmatprep.subr.mxu0 0.0
    %1454 = vmatpush1.msra.mxu0 0.0
    %1455 = vmatprep.subr.mxu0 0.0
    %1456 = vmatpush1.msra.mxu0 0.0
    %1457 = vmatprep.subr.mxu0 0.0
    %1458 = vmatpush1.msra.mxu0 0.0
    %1459 = vmatprep.subr.mxu0 0.0
    %1460 = vmatpush1.msra.mxu0 0.0
    %1461 = vmatprep.subr.mxu0 0.0
    %1462 = vmatpush1.msra.mxu0 0.0
    %1463 = vmatprep.subr.mxu0 0.0
    %1464 = vmatpush1.msra.mxu0 0.0
    %1465 = vmatprep.subr.mxu0 0.0
    %1466 = vmatpush1.msra.mxu0 0.0
    %1467 = vmatprep.subr.mxu0 0.0
    %1468 = vmatpush1.msra.mxu0 0.0
    %1469 = vmatprep.subr.mxu0 0.0
    %v1470 = vand.u32 %v1439, 4294901760
    %1471 = vmatpush1.msra.mxu0 %v1470
    %1472 = vmatprep.subr.mxu0 0.0
    %v1473 = vand.u32 %v1431, 4294901760
    %1474 = vmatpush1.msra.mxu0 %v1473
    %1475 = vmatprep.subr.mxu0 0.0
    %1476 = vmatpush2.msra.mxu0 0.0
    %1477 = vmatprep.subr.mxu0 0.0
    %1478 = vmatpush2.msra.mxu0 0.0
    %1479 = vmatprep.subr.mxu0 0.0
    %1480 = vmatpush2.msra.mxu0 0.0
    %1481 = vmatprep.subr.mxu0 0.0
    %1482 = vmatpush2.msra.mxu0 0.0
    %1483 = vmatprep.subr.mxu0 0.0
    %1484 = vmatpush2.msra.mxu0 0.0
    %1485 = vmatprep.subr.mxu0 0.0
    %1486 = vmatpush2.msra.mxu0 0.0
    %1487 = vmatprep.subr.mxu0 0.0
    %1488 = vmatpush2.msra.mxu0 0.0
    %1489 = vmatprep.subr.mxu0 0.0
    %1490 = vmatpush2.msra.mxu0 0.0
    %1491 = vmatprep.subr.mxu0 0.0
    %1492 = vmatpush2.msra.mxu0 0.0
    %1493 = vmatprep.subr.mxu0 0.0
    %1494 = vmatpush2.msra.mxu0 0.0
    %1495 = vmatprep.subr.mxu0 0.0
    %1496 = vmatpush2.msra.mxu0 0.0
    %1497 = vmatprep.subr.mxu0 0.0
    %1498 = vmatpush2.msra.mxu0 0.0
    %1499 = vmatprep.subr.mxu0 0.0
    %1500 = vmatpush2.msra.mxu0 0.0
    %1501 = vmatprep.subr.mxu0 0.0
    %1502 = vmatpush2.msra.mxu0 0.0
    %1503 = vmatprep.subr.mxu0 0.0
    %1504 = vmatpush2.msra.mxu0 0.0
    %1505 = vmatprep.subr.mxu0 0.0
    %1506 = vmatpush2.msra.mxu0 0.0
    %1507 = vmatprep.mubr.f32.mxu0 0.0
    %v1508 = vand.u32 %v1435, 4294901760
    %v1509 = vsub.f32 %v1435, %v1508
    %v1510 = vand.u32 %v1509, 4294901760
    %v1511 = vsub.f32 %v1509, %v1510
    %v1512 = vand.u32 %v1511, 4294901760
    %1513 = vmatmul.mubr.f32.gmra.mxu0 %v1512
    %v1514 = vpop.f32.mrf.mxu0
    %v1515 = vadd.f32 0.0, %v1514
    %v1516 = vpop.f32.mrf.mxu0
    %1517 = vdwg.mxu0
    %1518 = vmatprep.subr.mxu0 0.0
    %1519 = vmatpush1.msra.mxu0 0.0
    %1520 = vmatprep.subr.mxu0 0.0
    %1521 = vmatpush1.msra.mxu0 0.0
    %1522 = vmatprep.subr.mxu0 0.0
    %1523 = vmatpush1.msra.mxu0 0.0
    %1524 = vmatprep.subr.mxu0 0.0
    %1525 = vmatpush1.msra.mxu0 0.0
    %1526 = vmatprep.subr.mxu0 0.0
    %1527 = vmatpush1.msra.mxu0 0.0
    %1528 = vmatprep.subr.mxu0 0.0
    %1529 = vmatpush1.msra.mxu0 0.0
    %1530 = vmatprep.subr.mxu0 0.0
    %1531 = vmatpush1.msra.mxu0 0.0
    %1532 = vmatprep.subr.mxu0 0.0
    %1533 = vmatpush1.msra.mxu0 0.0
    %1534 = vmatprep.subr.mxu0 0.0
    %1535 = vmatpush1.msra.mxu0 0.0
    %1536 = vmatprep.subr.mxu0 0.0
    %1537 = vmatpush1.msra.mxu0 0.0
    %1538 = vmatprep.subr.mxu0 0.0
    %1539 = vmatpush1.msra.mxu0 0.0
    %1540 = vmatprep.subr.mxu0 0.0
    %1541 = vmatpush1.msra.mxu0 0.0
    %1542 = vmatprep.subr.mxu0 0.0
    %1543 = vmatpush1.msra.mxu0 0.0
    %1544 = vmatprep.subr.mxu0 0.0
    %1545 = vmatpush1.msra.mxu0 0.0
    %1546 = vmatprep.subr.mxu0 0.0
    %v1547 = vand.u32 %v1439, 4294901760
    %v1548 = vsub.f32 %v1439, %v1547
    %v1549 = vand.u32 %v1548, 4294901760
    %v1550 = vsub.f32 %v1548, %v1549
    %v1551 = vand.u32 %v1550, 4294901760
    %1552 = vmatpush1.msra.mxu0 %v1551
    %1553 = vmatprep.subr.mxu0 0.0
    %v1554 = vand.u32 %v1431, 4294901760
    %v1555 = vsub.f32 %v1431, %v1554
    %v1556 = vand.u32 %v1555, 4294901760
    %v1557 = vsub.f32 %v1555, %v1556
    %v1558 = vand.u32 %v1557, 4294901760
    %1559 = vmatpush1.msra.mxu0 %v1558
    %1560 = vmatprep.subr.mxu0 0.0
    %1561 = vmatpush2.msra.mxu0 0.0
    %1562 = vmatprep.subr.mxu0 0.0
    %1563 = vmatpush2.msra.mxu0 0.0
    %1564 = vmatprep.subr.mxu0 0.0
    %1565 = vmatpush2.msra.mxu0 0.0
    %1566 = vmatprep.subr.mxu0 0.0
    %1567 = vmatpush2.msra.mxu0 0.0
    %1568 = vmatprep.subr.mxu0 0.0
    %1569 = vmatpush2.msra.mxu0 0.0
    %1570 = vmatprep.subr.mxu0 0.0
    %1571 = vmatpush2.msra.mxu0 0.0
    %1572 = vmatprep.subr.mxu0 0.0
    %1573 = vmatpush2.msra.mxu0 0.0
    %1574 = vmatprep.subr.mxu0 0.0
    %1575 = vmatpush2.msra.mxu0 0.0
    %1576 = vmatprep.subr.mxu0 0.0
    %1577 = vmatpush2.msra.mxu0 0.0
    %1578 = vmatprep.subr.mxu0 0.0
    %1579 = vmatpush2.msra.mxu0 0.0
    %1580 = vmatprep.subr.mxu0 0.0
    %1581 = vmatpush2.msra.mxu0 0.0
    %1582 = vmatprep.subr.mxu0 0.0
    %1583 = vmatpush2.msra.mxu0 0.0
    %1584 = vmatprep.subr.mxu0 0.0
    %1585 = vmatpush2.msra.mxu0 0.0
    %1586 = vmatprep.subr.mxu0 0.0
    %1587 = vmatpush2.msra.mxu0 0.0
    %1588 = vmatprep.subr.mxu0 0.0
    %1589 = vmatpush2.msra.mxu0 0.0
    %1590 = vmatprep.subr.mxu0 0.0
    %1591 = vmatpush2.msra.mxu0 0.0
    %1592 = vmatprep.mubr.f32.mxu0 0.0
    %v1593 = vand.u32 %v1435, 4294901760
    %1594 = vmatmul.mubr.f32.gmra.mxu0 %v1593
    %v1595 = vpop.f32.mrf.mxu0
    %v1596 = vadd.f32 %v1515, %v1595
    %v1597 = vpop.f32.mrf.mxu0
    %1598 = vdwg.mxu0
    %1599 = vmatprep.subr.mxu0 0.0
    %1600 = vmatpush1.msra.mxu0 0.0
    %1601 = vmatprep.subr.mxu0 0.0
    %1602 = vmatpush1.msra.mxu0 0.0
    %1603 = vmatprep.subr.mxu0 0.0
    %1604 = vmatpush1.msra.mxu0 0.0
    %1605 = vmatprep.subr.mxu0 0.0
    %1606 = vmatpush1.msra.mxu0 0.0
    %1607 = vmatprep.subr.mxu0 0.0
    %1608 = vmatpush1.msra.mxu0 0.0
    %1609 = vmatprep.subr.mxu0 0.0
    %1610 = vmatpush1.msra.mxu0 0.0
    %1611 = vmatprep.subr.mxu0 0.0
    %1612 = vmatpush1.msra.mxu0 0.0
    %1613 = vmatprep.subr.mxu0 0.0
    %1614 = vmatpush1.msra.mxu0 0.0
    %1615 = vmatprep.subr.mxu0 0.0
    %1616 = vmatpush1.msra.mxu0 0.0
    %1617 = vmatprep.subr.mxu0 0.0
    %1618 = vmatpush1.msra.mxu0 0.0
    %1619 = vmatprep.subr.mxu0 0.0
    %1620 = vmatpush1.msra.mxu0 0.0
    %1621 = vmatprep.subr.mxu0 0.0
    %1622 = vmatpush1.msra.mxu0 0.0
    %1623 = vmatprep.subr.mxu0 0.0
    %1624 = vmatpush1.msra.mxu0 0.0
    %1625 = vmatprep.subr.mxu0 0.0
    %1626 = vmatpush1.msra.mxu0 0.0
    %1627 = vmatprep.subr.mxu0 0.0
    %v1628 = vand.u32 %v1439, 4294901760
    %v1629 = vsub.f32 %v1439, %v1628
    %1630 = vmatpush1.msra.mxu0 %v1629
    %1631 = vmatprep.subr.mxu0 0.0
    %v1632 = vand.u32 %v1431, 4294901760
    %v1633 = vsub.f32 %v1431, %v1632
    %1634 = vmatpush1.msra.mxu0 %v1633
    %1635 = vmatprep.subr.mxu0 0.0
    %1636 = vmatpush2.msra.mxu0 0.0
    %1637 = vmatprep.subr.mxu0 0.0
    %1638 = vmatpush2.msra.mxu0 0.0
    %1639 = vmatprep.subr.mxu0 0.0
    %1640 = vmatpush2.msra.mxu0 0.0
    %1641 = vmatprep.subr.mxu0 0.0
    %1642 = vmatpush2.msra.mxu0 0.0
    %1643 = vmatprep.subr.mxu0 0.0
    %1644 = vmatpush2.msra.mxu0 0.0
    %1645 = vmatprep.subr.mxu0 0.0
    %1646 = vmatpush2.msra.mxu0 0.0
    %1647 = vmatprep.subr.mxu0 0.0
    %1648 = vmatpush2.msra.mxu0 0.0
    %1649 = vmatprep.subr.mxu0 0.0
    %1650 = vmatpush2.msra.mxu0 0.0
    %1651 = vmatprep.subr.mxu0 0.0
    %1652 = vmatpush2.msra.mxu0 0.0
    %1653 = vmatprep.subr.mxu0 0.0
    %1654 = vmatpush2.msra.mxu0 0.0
    %1655 = vmatprep.subr.mxu0 0.0
    %1656 = vmatpush2.msra.mxu0 0.0
    %1657 = vmatprep.subr.mxu0 0.0
    %1658 = vmatpush2.msra.mxu0 0.0
    %1659 = vmatprep.subr.mxu0 0.0
    %1660 = vmatpush2.msra.mxu0 0.0
    %1661 = vmatprep.subr.mxu0 0.0
    %1662 = vmatpush2.msra.mxu0 0.0
    %1663 = vmatprep.subr.mxu0 0.0
    %1664 = vmatpush2.msra.mxu0 0.0
    %1665 = vmatprep.subr.mxu0 0.0
    %1666 = vmatpush2.msra.mxu0 0.0
    %1667 = vmatprep.mubr.f32.mxu0 0.0
    %v1668 = vand.u32 %v1435, 4294901760
    %v1669 = vsub.f32 %v1435, %v1668
    %1670 = vmatmul.mubr.f32.gmra.mxu0 %v1669
    %v1671 = vpop.f32.mrf.mxu0
    %v1672 = vadd.f32 %v1596, %v1671
    %v1673 = vpop.f32.mrf.mxu0
    %1674 = vdwg.mxu0
    %1675 = vmatprep.subr.mxu0 0.0
    %1676 = vmatpush1.msra.mxu0 0.0
    %1677 = vmatprep.subr.mxu0 0.0
    %1678 = vmatpush1.msra.mxu0 0.0
    %1679 = vmatprep.subr.mxu0 0.0
    %1680 = vmatpush1.msra.mxu0 0.0
    %1681 = vmatprep.subr.mxu0 0.0
    %1682 = vmatpush1.msra.mxu0 0.0
    %1683 = vmatprep.subr.mxu0 0.0
    %1684 = vmatpush1.msra.mxu0 0.0
    %1685 = vmatprep.subr.mxu0 0.0
    %1686 = vmatpush1.msra.mxu0 0.0
    %1687 = vmatprep.subr.mxu0 0.0
    %1688 = vmatpush1.msra.mxu0 0.0
    %1689 = vmatprep.subr.mxu0 0.0
    %1690 = vmatpush1.msra.mxu0 0.0
    %1691 = vmatprep.subr.mxu0 0.0
    %1692 = vmatpush1.msra.mxu0 0.0
    %1693 = vmatprep.subr.mxu0 0.0
    %1694 = vmatpush1.msra.mxu0 0.0
    %1695 = vmatprep.subr.mxu0 0.0
    %1696 = vmatpush1.msra.mxu0 0.0
    %1697 = vmatprep.subr.mxu0 0.0
    %1698 = vmatpush1.msra.mxu0 0.0
    %1699 = vmatprep.subr.mxu0 0.0
    %1700 = vmatpush1.msra.mxu0 0.0
    %1701 = vmatprep.subr.mxu0 0.0
    %1702 = vmatpush1.msra.mxu0 0.0
    %1703 = vmatprep.subr.mxu0 0.0
    %v1704 = vand.u32 %v1439, 4294901760
    %1705 = vmatpush1.msra.mxu0 %v1704
    %1706 = vmatprep.subr.mxu0 0.0
    %v1707 = vand.u32 %v1431, 4294901760
    %1708 = vmatpush1.msra.mxu0 %v1707
    %1709 = vmatprep.subr.mxu0 0.0
    %1710 = vmatpush2.msra.mxu0 0.0
    %1711 = vmatprep.subr.mxu0 0.0
    %1712 = vmatpush2.msra.mxu0 0.0
    %1713 = vmatprep.subr.mxu0 0.0
    %1714 = vmatpush2.msra.mxu0 0.0
    %1715 = vmatprep.subr.mxu0 0.0
    %1716 = vmatpush2.msra.mxu0 0.0
    %1717 = vmatprep.subr.mxu0 0.0
    %1718 = vmatpush2.msra.mxu0 0.0
    %1719 = vmatprep.subr.mxu0 0.0
    %1720 = vmatpush2.msra.mxu0 0.0
    %1721 = vmatprep.subr.mxu0 0.0
    %1722 = vmatpush2.msra.mxu0 0.0
    %1723 = vmatprep.subr.mxu0 0.0
    %1724 = vmatpush2.msra.mxu0 0.0
    %1725 = vmatprep.subr.mxu0 0.0
    %1726 = vmatpush2.msra.mxu0 0.0
    %1727 = vmatprep.subr.mxu0 0.0
    %1728 = vmatpush2.msra.mxu0 0.0
    %1729 = vmatprep.subr.mxu0 0.0
    %1730 = vmatpush2.msra.mxu0 0.0
    %1731 = vmatprep.subr.mxu0 0.0
    %1732 = vmatpush2.msra.mxu0 0.0
    %1733 = vmatprep.subr.mxu0 0.0
    %1734 = vmatpush2.msra.mxu0 0.0
    %1735 = vmatprep.subr.mxu0 0.0
    %1736 = vmatpush2.msra.mxu0 0.0
    %1737 = vmatprep.subr.mxu0 0.0
    %1738 = vmatpush2.msra.mxu0 0.0
    %1739 = vmatprep.subr.mxu0 0.0
    %1740 = vmatpush2.msra.mxu0 0.0
    %1741 = vmatprep.mubr.f32.mxu0 0.0
    %v1742 = vand.u32 %v1435, 4294901760
    %v1743 = vsub.f32 %v1435, %v1742
    %v1744 = vand.u32 %v1743, 4294901760
    %1745 = vmatmul.mubr.f32.gmra.mxu0 %v1744
    %v1746 = vpop.f32.mrf.mxu0
    %v1747 = vadd.f32 %v1672, %v1746
    %v1748 = vpop.f32.mrf.mxu0
    %1749 = vdwg.mxu0
    %1750 = vmatprep.subr.mxu0 0.0
    %1751 = vmatpush1.msra.mxu0 0.0
    %1752 = vmatprep.subr.mxu0 0.0
    %1753 = vmatpush1.msra.mxu0 0.0
    %1754 = vmatprep.subr.mxu0 0.0
    %1755 = vmatpush1.msra.mxu0 0.0
    %1756 = vmatprep.subr.mxu0 0.0
    %1757 = vmatpush1.msra.mxu0 0.0
    %1758 = vmatprep.subr.mxu0 0.0
    %1759 = vmatpush1.msra.mxu0 0.0
    %1760 = vmatprep.subr.mxu0 0.0
    %1761 = vmatpush1.msra.mxu0 0.0
    %1762 = vmatprep.subr.mxu0 0.0
    %1763 = vmatpush1.msra.mxu0 0.0
    %1764 = vmatprep.subr.mxu0 0.0
    %1765 = vmatpush1.msra.mxu0 0.0
    %1766 = vmatprep.subr.mxu0 0.0
    %1767 = vmatpush1.msra.mxu0 0.0
    %1768 = vmatprep.subr.mxu0 0.0
    %1769 = vmatpush1.msra.mxu0 0.0
    %1770 = vmatprep.subr.mxu0 0.0
    %1771 = vmatpush1.msra.mxu0 0.0
    %1772 = vmatprep.subr.mxu0 0.0
    %1773 = vmatpush1.msra.mxu0 0.0
    %1774 = vmatprep.subr.mxu0 0.0
    %1775 = vmatpush1.msra.mxu0 0.0
    %1776 = vmatprep.subr.mxu0 0.0
    %1777 = vmatpush1.msra.mxu0 0.0
    %1778 = vmatprep.subr.mxu0 0.0
    %v1779 = vand.u32 %v1439, 4294901760
    %v1780 = vsub.f32 %v1439, %v1779
    %v1781 = vand.u32 %v1780, 4294901760
    %1782 = vmatpush1.msra.mxu0 %v1781
    %1783 = vmatprep.subr.mxu0 0.0
    %v1784 = vand.u32 %v1431, 4294901760
    %v1785 = vsub.f32 %v1431, %v1784
    %v1786 = vand.u32 %v1785, 4294901760
    %1787 = vmatpush1.msra.mxu0 %v1786
    %1788 = vmatprep.subr.mxu0 0.0
    %1789 = vmatpush2.msra.mxu0 0.0
    %1790 = vmatprep.subr.mxu0 0.0
    %1791 = vmatpush2.msra.mxu0 0.0
    %1792 = vmatprep.subr.mxu0 0.0
    %1793 = vmatpush2.msra.mxu0 0.0
    %1794 = vmatprep.subr.mxu0 0.0
    %1795 = vmatpush2.msra.mxu0 0.0
    %1796 = vmatprep.subr.mxu0 0.0
    %1797 = vmatpush2.msra.mxu0 0.0
    %1798 = vmatprep.subr.mxu0 0.0
    %1799 = vmatpush2.msra.mxu0 0.0
    %1800 = vmatprep.subr.mxu0 0.0
    %1801 = vmatpush2.msra.mxu0 0.0
    %1802 = vmatprep.subr.mxu0 0.0
    %1803 = vmatpush2.msra.mxu0 0.0
    %1804 = vmatprep.subr.mxu0 0.0
    %1805 = vmatpush2.msra.mxu0 0.0
    %1806 = vmatprep.subr.mxu0 0.0
    %1807 = vmatpush2.msra.mxu0 0.0
    %1808 = vmatprep.subr.mxu0 0.0
    %1809 = vmatpush2.msra.mxu0 0.0
    %1810 = vmatprep.subr.mxu0 0.0
    %1811 = vmatpush2.msra.mxu0 0.0
    %1812 = vmatprep.subr.mxu0 0.0
    %1813 = vmatpush2.msra.mxu0 0.0
    %1814 = vmatprep.subr.mxu0 0.0
    %1815 = vmatpush2.msra.mxu0 0.0
    %1816 = vmatprep.subr.mxu0 0.0
    %1817 = vmatpush2.msra.mxu0 0.0
    %1818 = vmatprep.subr.mxu0 0.0
    %1819 = vmatpush2.msra.mxu0 0.0
    %1820 = vmatprep.mubr.f32.mxu0 0.0
    %v1821 = vand.u32 %v1435, 4294901760
    %1822 = vmatmul.mubr.f32.gmra.mxu0 %v1821
    %v1823 = vpop.f32.mrf.mxu0
    %v1824 = vadd.f32 %v1747, %v1823
    %v1825 = vpop.f32.mrf.mxu0
    %1826 = vdwg.mxu0
    %1827 = vmatprep.subr.mxu0 0.0
    %1828 = vmatpush1.msra.mxu0 0.0
    %1829 = vmatprep.subr.mxu0 0.0
    %1830 = vmatpush1.msra.mxu0 0.0
    %1831 = vmatprep.subr.mxu0 0.0
    %1832 = vmatpush1.msra.mxu0 0.0
    %1833 = vmatprep.subr.mxu0 0.0
    %1834 = vmatpush1.msra.mxu0 0.0
    %1835 = vmatprep.subr.mxu0 0.0
    %1836 = vmatpush1.msra.mxu0 0.0
    %1837 = vmatprep.subr.mxu0 0.0
    %1838 = vmatpush1.msra.mxu0 0.0
    %1839 = vmatprep.subr.mxu0 0.0
    %1840 = vmatpush1.msra.mxu0 0.0
    %1841 = vmatprep.subr.mxu0 0.0
    %1842 = vmatpush1.msra.mxu0 0.0
    %1843 = vmatprep.subr.mxu0 0.0
    %1844 = vmatpush1.msra.mxu0 0.0
    %1845 = vmatprep.subr.mxu0 0.0
    %1846 = vmatpush1.msra.mxu0 0.0
    %1847 = vmatprep.subr.mxu0 0.0
    %1848 = vmatpush1.msra.mxu0 0.0
    %1849 = vmatprep.subr.mxu0 0.0
    %1850 = vmatpush1.msra.mxu0 0.0
    %1851 = vmatprep.subr.mxu0 0.0
    %1852 = vmatpush1.msra.mxu0 0.0
    %1853 = vmatprep.subr.mxu0 0.0
    %1854 = vmatpush1.msra.mxu0 0.0
    %1855 = vmatprep.subr.mxu0 0.0
    %v1856 = vand.u32 %v1439, 4294901760
    %1857 = vmatpush1.msra.mxu0 %v1856
    %1858 = vmatprep.subr.mxu0 0.0
    %v1859 = vand.u32 %v1431, 4294901760
    %1860 = vmatpush1.msra.mxu0 %v1859
    %1861 = vmatprep.subr.mxu0 0.0
    %1862 = vmatpush2.msra.mxu0 0.0
    %1863 = vmatprep.subr.mxu0 0.0
    %1864 = vmatpush2.msra.mxu0 0.0
    %1865 = vmatprep.subr.mxu0 0.0
    %1866 = vmatpush2.msra.mxu0 0.0
    %1867 = vmatprep.subr.mxu0 0.0
    %1868 = vmatpush2.msra.mxu0 0.0
    %1869 = vmatprep.subr.mxu0 0.0
    %1870 = vmatpush2.msra.mxu0 0.0
    %1871 = vmatprep.subr.mxu0 0.0
    %1872 = vmatpush2.msra.mxu0 0.0
    %1873 = vmatprep.subr.mxu0 0.0
    %1874 = vmatpush2.msra.mxu0 0.0
    %1875 = vmatprep.subr.mxu0 0.0
    %1876 = vmatpush2.msra.mxu0 0.0
    %1877 = vmatprep.subr.mxu0 0.0
    %1878 = vmatpush2.msra.mxu0 0.0
    %1879 = vmatprep.subr.mxu0 0.0
    %1880 = vmatpush2.msra.mxu0 0.0
    %1881 = vmatprep.subr.mxu0 0.0
    %1882 = vmatpush2.msra.mxu0 0.0
    %1883 = vmatprep.subr.mxu0 0.0
    %1884 = vmatpush2.msra.mxu0 0.0
    %1885 = vmatprep.subr.mxu0 0.0
    %1886 = vmatpush2.msra.mxu0 0.0
    %1887 = vmatprep.subr.mxu0 0.0
    %1888 = vmatpush2.msra.mxu0 0.0
    %1889 = vmatprep.subr.mxu0 0.0
    %1890 = vmatpush2.msra.mxu0 0.0
    %1891 = vmatprep.subr.mxu0 0.0
    %1892 = vmatpush2.msra.mxu0 0.0
    %1893 = vmatprep.mubr.f32.mxu0 0.0
    %v1894 = vand.u32 %v1435, 4294901760
    %1895 = vmatmul.mubr.f32.gmra.mxu0 %v1894
    %v1896 = vpop.f32.mrf.mxu0
    %v1897 = vadd.f32 %v1824, %v1896
    %v1898 = vpop.f32.mrf.mxu0
    %1899 = vdwg.mxu0
    %v1900 = vld [vmem:[%s4] sm:$0xff]
    %v1901 = vld [vmem:[%s4 + $0x8] sm:$0xf]
    %v1903 = vsel %vm1437, %v1901, 0
    %1905 = vmatprep.subr.mxu0 0.0
    %1906 = vmatpush1.msra.mxu0 0.0
    %1907 = vmatprep.subr.mxu0 0.0
    %1908 = vmatpush1.msra.mxu0 0.0
    %1909 = vmatprep.subr.mxu0 0.0
    %1910 = vmatpush1.msra.mxu0 0.0
    %1911 = vmatprep.subr.mxu0 0.0
    %1912 = vmatpush1.msra.mxu0 0.0
    %1913 = vmatprep.subr.mxu0 0.0
    %1914 = vmatpush1.msra.mxu0 0.0
    %1915 = vmatprep.subr.mxu0 0.0
    %1916 = vmatpush1.msra.mxu0 0.0
    %1917 = vmatprep.subr.mxu0 0.0
    %1918 = vmatpush1.msra.mxu0 0.0
    %1919 = vmatprep.subr.mxu0 0.0
    %1920 = vmatpush1.msra.mxu0 0.0
    %1921 = vmatprep.subr.mxu0 0.0
    %1922 = vmatpush1.msra.mxu0 0.0
    %1923 = vmatprep.subr.mxu0 0.0
    %1924 = vmatpush1.msra.mxu0 0.0
    %1925 = vmatprep.subr.mxu0 0.0
    %1926 = vmatpush1.msra.mxu0 0.0
    %1927 = vmatprep.subr.mxu0 0.0
    %1928 = vmatpush1.msra.mxu0 0.0
    %1929 = vmatprep.subr.mxu0 0.0
    %1930 = vmatpush1.msra.mxu0 0.0
    %1931 = vmatprep.subr.mxu0 0.0
    %1932 = vmatpush1.msra.mxu0 0.0
    %1933 = vmatprep.subr.mxu0 0.0
    %v1934 = vand.u32 %v1903, 4294901760
    %1935 = vmatpush1.msra.mxu0 %v1934
    %1936 = vmatprep.subr.mxu0 0.0
    %v1937 = vand.u32 %v1900, 4294901760
    %1938 = vmatpush1.msra.mxu0 %v1937
    %1939 = vmatprep.subr.mxu0 0.0
    %1940 = vmatpush2.msra.mxu0 0.0
    %1941 = vmatprep.subr.mxu0 0.0
    %1942 = vmatpush2.msra.mxu0 0.0
    %1943 = vmatprep.subr.mxu0 0.0
    %1944 = vmatpush2.msra.mxu0 0.0
    %1945 = vmatprep.subr.mxu0 0.0
    %1946 = vmatpush2.msra.mxu0 0.0
    %1947 = vmatprep.subr.mxu0 0.0
    %1948 = vmatpush2.msra.mxu0 0.0
    %1949 = vmatprep.subr.mxu0 0.0
    %1950 = vmatpush2.msra.mxu0 0.0
    %1951 = vmatprep.subr.mxu0 0.0
    %1952 = vmatpush2.msra.mxu0 0.0
    %1953 = vmatprep.subr.mxu0 0.0
    %1954 = vmatpush2.msra.mxu0 0.0
    %1955 = vmatprep.subr.mxu0 0.0
    %1956 = vmatpush2.msra.mxu0 0.0
    %1957 = vmatprep.subr.mxu0 0.0
    %1958 = vmatpush2.msra.mxu0 0.0
    %1959 = vmatprep.subr.mxu0 0.0
    %1960 = vmatpush2.msra.mxu0 0.0
    %1961 = vmatprep.subr.mxu0 0.0
    %1962 = vmatpush2.msra.mxu0 0.0
    %1963 = vmatprep.subr.mxu0 0.0
    %1964 = vmatpush2.msra.mxu0 0.0
    %1965 = vmatprep.subr.mxu0 0.0
    %1966 = vmatpush2.msra.mxu0 0.0
    %1967 = vmatprep.subr.mxu0 0.0
    %1968 = vmatpush2.msra.mxu0 0.0
    %1969 = vmatprep.subr.mxu0 0.0
    %1970 = vmatpush2.msra.mxu0 0.0
    %1971 = vmatprep.mubr.f32.mxu0 0.0
    %v1972 = vand.u32 %v1435, 4294901760
    %v1973 = vsub.f32 %v1435, %v1972
    %v1974 = vand.u32 %v1973, 4294901760
    %v1975 = vsub.f32 %v1973, %v1974
    %v1976 = vand.u32 %v1975, 4294901760
    %1977 = vmatmul.mubr.f32.gmra.mxu0 %v1976
    %v1978 = vpop.f32.mrf.mxu0
    %v1979 = vadd.f32 0.0, %v1978
    %v1980 = vpop.f32.mrf.mxu0
    %1981 = vdwg.mxu0
    %1982 = vmatprep.subr.mxu0 0.0
    %1983 = vmatpush1.msra.mxu0 0.0
    %1984 = vmatprep.subr.mxu0 0.0
    %1985 = vmatpush1.msra.mxu0 0.0
    %1986 = vmatprep.subr.mxu0 0.0
    %1987 = vmatpush1.msra.mxu0 0.0
    %1988 = vmatprep.subr.mxu0 0.0
    %1989 = vmatpush1.msra.mxu0 0.0
    %1990 = vmatprep.subr.mxu0 0.0
    %1991 = vmatpush1.msra.mxu0 0.0
    %1992 = vmatprep.subr.mxu0 0.0
    %1993 = vmatpush1.msra.mxu0 0.0
    %1994 = vmatprep.subr.mxu0 0.0
    %1995 = vmatpush1.msra.mxu0 0.0
    %1996 = vmatprep.subr.mxu0 0.0
    %1997 = vmatpush1.msra.mxu0 0.0
    %1998 = vmatprep.subr.mxu0 0.0
    %1999 = vmatpush1.msra.mxu0 0.0
    %2000 = vmatprep.subr.mxu0 0.0
    %2001 = vmatpush1.msra.mxu0 0.0
    %2002 = vmatprep.subr.mxu0 0.0
    %2003 = vmatpush1.msra.mxu0 0.0
    %2004 = vmatprep.subr.mxu0 0.0
    %2005 = vmatpush1.msra.mxu0 0.0
    %2006 = vmatprep.subr.mxu0 0.0
    %2007 = vmatpush1.msra.mxu0 0.0
    %2008 = vmatprep.subr.mxu0 0.0
    %2009 = vmatpush1.msra.mxu0 0.0
    %2010 = vmatprep.subr.mxu0 0.0
    %v2011 = vand.u32 %v1903, 4294901760
    %v2012 = vsub.f32 %v1903, %v2011
    %v2013 = vand.u32 %v2012, 4294901760
    %v2014 = vsub.f32 %v2012, %v2013
    %v2015 = vand.u32 %v2014, 4294901760
    %2016 = vmatpush1.msra.mxu0 %v2015
    %2017 = vmatprep.subr.mxu0 0.0
    %v2018 = vand.u32 %v1900, 4294901760
    %v2019 = vsub.f32 %v1900, %v2018
    %v2020 = vand.u32 %v2019, 4294901760
    %v2021 = vsub.f32 %v2019, %v2020
    %v2022 = vand.u32 %v2021, 4294901760
    %2023 = vmatpush1.msra.mxu0 %v2022
    %2024 = vmatprep.subr.mxu0 0.0
    %2025 = vmatpush2.msra.mxu0 0.0
    %2026 = vmatprep.subr.mxu0 0.0
    %2027 = vmatpush2.msra.mxu0 0.0
    %2028 = vmatprep.subr.mxu0 0.0
    %2029 = vmatpush2.msra.mxu0 0.0
    %2030 = vmatprep.subr.mxu0 0.0
    %2031 = vmatpush2.msra.mxu0 0.0
    %2032 = vmatprep.subr.mxu0 0.0
    %2033 = vmatpush2.msra.mxu0 0.0
    %2034 = vmatprep.subr.mxu0 0.0
    %2035 = vmatpush2.msra.mxu0 0.0
    %2036 = vmatprep.subr.mxu0 0.0
    %2037 = vmatpush2.msra.mxu0 0.0
    %2038 = vmatprep.subr.mxu0 0.0
    %2039 = vmatpush2.msra.mxu0 0.0
    %2040 = vmatprep.subr.mxu0 0.0
    %2041 = vmatpush2.msra.mxu0 0.0
    %2042 = vmatprep.subr.mxu0 0.0
    %2043 = vmatpush2.msra.mxu0 0.0
    %2044 = vmatprep.subr.mxu0 0.0
    %2045 = vmatpush2.msra.mxu0 0.0
    %2046 = vmatprep.subr.mxu0 0.0
    %2047 = vmatpush2.msra.mxu0 0.0
    %2048 = vmatprep.subr.mxu0 0.0
    %2049 = vmatpush2.msra.mxu0 0.0
    %2050 = vmatprep.subr.mxu0 0.0
    %2051 = vmatpush2.msra.mxu0 0.0
    %2052 = vmatprep.subr.mxu0 0.0
    %2053 = vmatpush2.msra.mxu0 0.0
    %2054 = vmatprep.subr.mxu0 0.0
    %2055 = vmatpush2.msra.mxu0 0.0
    %2056 = vmatprep.mubr.f32.mxu0 0.0
    %v2057 = vand.u32 %v1435, 4294901760
    %2058 = vmatmul.mubr.f32.gmra.mxu0 %v2057
    %v2059 = vpop.f32.mrf.mxu0
    %v2060 = vadd.f32 %v1979, %v2059
    %v2061 = vpop.f32.mrf.mxu0
    %2062 = vdwg.mxu0
    %2063 = vmatprep.subr.mxu0 0.0
    %2064 = vmatpush1.msra.mxu0 0.0
    %2065 = vmatprep.subr.mxu0 0.0
    %2066 = vmatpush1.msra.mxu0 0.0
    %2067 = vmatprep.subr.mxu0 0.0
    %2068 = vmatpush1.msra.mxu0 0.0
    %2069 = vmatprep.subr.mxu0 0.0
    %2070 = vmatpush1.msra.mxu0 0.0
    %2071 = vmatprep.subr.mxu0 0.0
    %2072 = vmatpush1.msra.mxu0 0.0
    %2073 = vmatprep.subr.mxu0 0.0
    %2074 = vmatpush1.msra.mxu0 0.0
    %2075 = vmatprep.subr.mxu0 0.0
    %2076 = vmatpush1.msra.mxu0 0.0
    %2077 = vmatprep.subr.mxu0 0.0
    %2078 = vmatpush1.msra.mxu0 0.0
    %2079 = vmatprep.subr.mxu0 0.0
    %2080 = vmatpush1.msra.mxu0 0.0
    %2081 = vmatprep.subr.mxu0 0.0
    %2082 = vmatpush1.msra.mxu0 0.0
    %2083 = vmatprep.subr.mxu0 0.0
    %2084 = vmatpush1.msra.mxu0 0.0
    %2085 = vmatprep.subr.mxu0 0.0
    %2086 = vmatpush1.msra.mxu0 0.0
    %2087 = vmatprep.subr.mxu0 0.0
    %2088 = vmatpush1.msra.mxu0 0.0
    %2089 = vmatprep.subr.mxu0 0.0
    %2090 = vmatpush1.msra.mxu0 0.0
    %2091 = vmatprep.subr.mxu0 0.0
    %v2092 = vand.u32 %v1903, 4294901760
    %v2093 = vsub.f32 %v1903, %v2092
    %2094 = vmatpush1.msra.mxu0 %v2093
    %2095 = vmatprep.subr.mxu0 0.0
    %v2096 = vand.u32 %v1900, 4294901760
    %v2097 = vsub.f32 %v1900, %v2096
    %2098 = vmatpush1.msra.mxu0 %v2097
    %2099 = vmatprep.subr.mxu0 0.0
    %2100 = vmatpush2.msra.mxu0 0.0
    %2101 = vmatprep.subr.mxu0 0.0
    %2102 = vmatpush2.msra.mxu0 0.0
    %2103 = vmatprep.subr.mxu0 0.0
    %2104 = vmatpush2.msra.mxu0 0.0
    %2105 = vmatprep.subr.mxu0 0.0
    %2106 = vmatpush2.msra.mxu0 0.0
    %2107 = vmatprep.subr.mxu0 0.0
    %2108 = vmatpush2.msra.mxu0 0.0
    %2109 = vmatprep.subr.mxu0 0.0
    %2110 = vmatpush2.msra.mxu0 0.0
    %2111 = vmatprep.subr.mxu0 0.0
    %2112 = vmatpush2.msra.mxu0 0.0
    %2113 = vmatprep.subr.mxu0 0.0
    %2114 = vmatpush2.msra.mxu0 0.0
    %2115 = vmatprep.subr.mxu0 0.0
    %2116 = vmatpush2.msra.mxu0 0.0
    %2117 = vmatprep.subr.mxu0 0.0
    %2118 = vmatpush2.msra.mxu0 0.0
    %2119 = vmatprep.subr.mxu0 0.0
    %2120 = vmatpush2.msra.mxu0 0.0
    %2121 = vmatprep.subr.mxu0 0.0
    %2122 = vmatpush2.msra.mxu0 0.0
    %2123 = vmatprep.subr.mxu0 0.0
    %2124 = vmatpush2.msra.mxu0 0.0
    %2125 = vmatprep.subr.mxu0 0.0
    %2126 = vmatpush2.msra.mxu0 0.0
    %2127 = vmatprep.subr.mxu0 0.0
    %2128 = vmatpush2.msra.mxu0 0.0
    %2129 = vmatprep.subr.mxu0 0.0
    %2130 = vmatpush2.msra.mxu0 0.0
    %2131 = vmatprep.mubr.f32.mxu0 0.0
    %v2132 = vand.u32 %v1435, 4294901760
    %v2133 = vsub.f32 %v1435, %v2132
    %2134 = vmatmul.mubr.f32.gmra.mxu0 %v2133
    %v2135 = vpop.f32.mrf.mxu0
    %v2136 = vadd.f32 %v2060, %v2135
    %v2137 = vpop.f32.mrf.mxu0
    %2138 = vdwg.mxu0
    %2139 = vmatprep.subr.mxu0 0.0
    %2140 = vmatpush1.msra.mxu0 0.0
    %2141 = vmatprep.subr.mxu0 0.0
    %2142 = vmatpush1.msra.mxu0 0.0
    %2143 = vmatprep.subr.mxu0 0.0
    %2144 = vmatpush1.msra.mxu0 0.0
    %2145 = vmatprep.subr.mxu0 0.0
    %2146 = vmatpush1.msra.mxu0 0.0
    %2147 = vmatprep.subr.mxu0 0.0
    %2148 = vmatpush1.msra.mxu0 0.0
    %2149 = vmatprep.subr.mxu0 0.0
    %2150 = vmatpush1.msra.mxu0 0.0
    %2151 = vmatprep.subr.mxu0 0.0
    %2152 = vmatpush1.msra.mxu0 0.0
    %2153 = vmatprep.subr.mxu0 0.0
    %2154 = vmatpush1.msra.mxu0 0.0
    %2155 = vmatprep.subr.mxu0 0.0
    %2156 = vmatpush1.msra.mxu0 0.0
    %2157 = vmatprep.subr.mxu0 0.0
    %2158 = vmatpush1.msra.mxu0 0.0
    %2159 = vmatprep.subr.mxu0 0.0
    %2160 = vmatpush1.msra.mxu0 0.0
    %2161 = vmatprep.subr.mxu0 0.0
    %2162 = vmatpush1.msra.mxu0 0.0
    %2163 = vmatprep.subr.mxu0 0.0
    %2164 = vmatpush1.msra.mxu0 0.0
    %2165 = vmatprep.subr.mxu0 0.0
    %2166 = vmatpush1.msra.mxu0 0.0
    %2167 = vmatprep.subr.mxu0 0.0
    %v2168 = vand.u32 %v1903, 4294901760
    %2169 = vmatpush1.msra.mxu0 %v2168
    %2170 = vmatprep.subr.mxu0 0.0
    %v2171 = vand.u32 %v1900, 4294901760
    %2172 = vmatpush1.msra.mxu0 %v2171
    %2173 = vmatprep.subr.mxu0 0.0
    %2174 = vmatpush2.msra.mxu0 0.0
    %2175 = vmatprep.subr.mxu0 0.0
    %2176 = vmatpush2.msra.mxu0 0.0
    %2177 = vmatprep.subr.mxu0 0.0
    %2178 = vmatpush2.msra.mxu0 0.0
    %2179 = vmatprep.subr.mxu0 0.0
    %2180 = vmatpush2.msra.mxu0 0.0
    %2181 = vmatprep.subr.mxu0 0.0
    %2182 = vmatpush2.msra.mxu0 0.0
    %2183 = vmatprep.subr.mxu0 0.0
    %2184 = vmatpush2.msra.mxu0 0.0
    %2185 = vmatprep.subr.mxu0 0.0
    %2186 = vmatpush2.msra.mxu0 0.0
    %2187 = vmatprep.subr.mxu0 0.0
    %2188 = vmatpush2.msra.mxu0 0.0
    %2189 = vmatprep.subr.mxu0 0.0
    %2190 = vmatpush2.msra.mxu0 0.0
    %2191 = vmatprep.subr.mxu0 0.0
    %2192 = vmatpush2.msra.mxu0 0.0
    %2193 = vmatprep.subr.mxu0 0.0
    %2194 = vmatpush2.msra.mxu0 0.0
    %2195 = vmatprep.subr.mxu0 0.0
    %2196 = vmatpush2.msra.mxu0 0.0
    %2197 = vmatprep.subr.mxu0 0.0
    %2198 = vmatpush2.msra.mxu0 0.0
    %2199 = vmatprep.subr.mxu0 0.0
    %2200 = vmatpush2.msra.mxu0 0.0
    %2201 = vmatprep.subr.mxu0 0.0
    %2202 = vmatpush2.msra.mxu0 0.0
    %2203 = vmatprep.subr.mxu0 0.0
    %2204 = vmatpush2.msra.mxu0 0.0
    %2205 = vmatprep.mubr.f32.mxu0 0.0
    %v2206 = vand.u32 %v1435, 4294901760
    %v2207 = vsub.f32 %v1435, %v2206
    %v2208 = vand.u32 %v2207, 4294901760
    %2209 = vmatmul.mubr.f32.gmra.mxu0 %v2208
    %v2210 = vpop.f32.mrf.mxu0
    %v2211 = vadd.f32 %v2136, %v2210
    %v2212 = vpop.f32.mrf.mxu0
    %2213 = vdwg.mxu0
    %2214 = vmatprep.subr.mxu0 0.0
    %2215 = vmatpush1.msra.mxu0 0.0
    %2216 = vmatprep.subr.mxu0 0.0
    %2217 = vmatpush1.msra.mxu0 0.0
    %2218 = vmatprep.subr.mxu0 0.0
    %2219 = vmatpush1.msra.mxu0 0.0
    %2220 = vmatprep.subr.mxu0 0.0
    %2221 = vmatpush1.msra.mxu0 0.0
    %2222 = vmatprep.subr.mxu0 0.0
    %2223 = vmatpush1.msra.mxu0 0.0
    %2224 = vmatprep.subr.mxu0 0.0
    %2225 = vmatpush1.msra.mxu0 0.0
    %2226 = vmatprep.subr.mxu0 0.0
    %2227 = vmatpush1.msra.mxu0 0.0
    %2228 = vmatprep.subr.mxu0 0.0
    %2229 = vmatpush1.msra.mxu0 0.0
    %2230 = vmatprep.subr.mxu0 0.0
    %2231 = vmatpush1.msra.mxu0 0.0
    %2232 = vmatprep.subr.mxu0 0.0
    %2233 = vmatpush1.msra.mxu0 0.0
    %2234 = vmatprep.subr.mxu0 0.0
    %2235 = vmatpush1.msra.mxu0 0.0
    %2236 = vmatprep.subr.mxu0 0.0
    %2237 = vmatpush1.msra.mxu0 0.0
    %2238 = vmatprep.subr.mxu0 0.0
    %2239 = vmatpush1.msra.mxu0 0.0
    %2240 = vmatprep.subr.mxu0 0.0
    %2241 = vmatpush1.msra.mxu0 0.0
    %2242 = vmatprep.subr.mxu0 0.0
    %v2243 = vand.u32 %v1903, 4294901760
    %v2244 = vsub.f32 %v1903, %v2243
    %v2245 = vand.u32 %v2244, 4294901760
    %2246 = vmatpush1.msra.mxu0 %v2245
    %2247 = vmatprep.subr.mxu0 0.0
    %v2248 = vand.u32 %v1900, 4294901760
    %v2249 = vsub.f32 %v1900, %v2248
    %v2250 = vand.u32 %v2249, 4294901760
    %2251 = vmatpush1.msra.mxu0 %v2250
    %2252 = vmatprep.subr.mxu0 0.0
    %2253 = vmatpush2.msra.mxu0 0.0
    %2254 = vmatprep.subr.mxu0 0.0
    %2255 = vmatpush2.msra.mxu0 0.0
    %2256 = vmatprep.subr.mxu0 0.0
    %2257 = vmatpush2.msra.mxu0 0.0
    %2258 = vmatprep.subr.mxu0 0.0
    %2259 = vmatpush2.msra.mxu0 0.0
    %2260 = vmatprep.subr.mxu0 0.0
    %2261 = vmatpush2.msra.mxu0 0.0
    %2262 = vmatprep.subr.mxu0 0.0
    %2263 = vmatpush2.msra.mxu0 0.0
    %2264 = vmatprep.subr.mxu0 0.0
    %2265 = vmatpush2.msra.mxu0 0.0
    %2266 = vmatprep.subr.mxu0 0.0
    %2267 = vmatpush2.msra.mxu0 0.0
    %2268 = vmatprep.subr.mxu0 0.0
    %2269 = vmatpush2.msra.mxu0 0.0
    %2270 = vmatprep.subr.mxu0 0.0
    %2271 = vmatpush2.msra.mxu0 0.0
    %2272 = vmatprep.subr.mxu0 0.0
    %2273 = vmatpush2.msra.mxu0 0.0
    %2274 = vmatprep.subr.mxu0 0.0
    %2275 = vmatpush2.msra.mxu0 0.0
    %2276 = vmatprep.subr.mxu0 0.0
    %2277 = vmatpush2.msra.mxu0 0.0
    %2278 = vmatprep.subr.mxu0 0.0
    %2279 = vmatpush2.msra.mxu0 0.0
    %2280 = vmatprep.subr.mxu0 0.0
    %2281 = vmatpush2.msra.mxu0 0.0
    %2282 = vmatprep.subr.mxu0 0.0
    %2283 = vmatpush2.msra.mxu0 0.0
    %2284 = vmatprep.mubr.f32.mxu0 0.0
    %v2285 = vand.u32 %v1435, 4294901760
    %2286 = vmatmul.mubr.f32.gmra.mxu0 %v2285
    %v2287 = vpop.f32.mrf.mxu0
    %v2288 = vadd.f32 %v2211, %v2287
    %v2289 = vpop.f32.mrf.mxu0
    %2290 = vdwg.mxu0
    %2291 = vmatprep.subr.mxu0 0.0
    %2292 = vmatpush1.msra.mxu0 0.0
    %2293 = vmatprep.subr.mxu0 0.0
    %2294 = vmatpush1.msra.mxu0 0.0
    %2295 = vmatprep.subr.mxu0 0.0
    %2296 = vmatpush1.msra.mxu0 0.0
    %2297 = vmatprep.subr.mxu0 0.0
    %2298 = vmatpush1.msra.mxu0 0.0
    %2299 = vmatprep.subr.mxu0 0.0
    %2300 = vmatpush1.msra.mxu0 0.0
    %2301 = vmatprep.subr.mxu0 0.0
    %2302 = vmatpush1.msra.mxu0 0.0
    %2303 = vmatprep.subr.mxu0 0.0
    %2304 = vmatpush1.msra.mxu0 0.0
    %2305 = vmatprep.subr.mxu0 0.0
    %2306 = vmatpush1.msra.mxu0 0.0
    %2307 = vmatprep.subr.mxu0 0.0
    %2308 = vmatpush1.msra.mxu0 0.0
    %2309 = vmatprep.subr.mxu0 0.0
    %2310 = vmatpush1.msra.mxu0 0.0
    %2311 = vmatprep.subr.mxu0 0.0
    %2312 = vmatpush1.msra.mxu0 0.0
    %2313 = vmatprep.subr.mxu0 0.0
    %2314 = vmatpush1.msra.mxu0 0.0
    %2315 = vmatprep.subr.mxu0 0.0
    %2316 = vmatpush1.msra.mxu0 0.0
    %2317 = vmatprep.subr.mxu0 0.0
    %2318 = vmatpush1.msra.mxu0 0.0
    %2319 = vmatprep.subr.mxu0 0.0
    %v2320 = vand.u32 %v1903, 4294901760
    %2321 = vmatpush1.msra.mxu0 %v2320
    %2322 = vmatprep.subr.mxu0 0.0
    %v2323 = vand.u32 %v1900, 4294901760
    %2324 = vmatpush1.msra.mxu0 %v2323
    %2325 = vmatprep.subr.mxu0 0.0
    %2326 = vmatpush2.msra.mxu0 0.0
    %2327 = vmatprep.subr.mxu0 0.0
    %2328 = vmatpush2.msra.mxu0 0.0
    %2329 = vmatprep.subr.mxu0 0.0
    %2330 = vmatpush2.msra.mxu0 0.0
    %2331 = vmatprep.subr.mxu0 0.0
    %2332 = vmatpush2.msra.mxu0 0.0
    %2333 = vmatprep.subr.mxu0 0.0
    %2334 = vmatpush2.msra.mxu0 0.0
    %2335 = vmatprep.subr.mxu0 0.0
    %2336 = vmatpush2.msra.mxu0 0.0
    %2337 = vmatprep.subr.mxu0 0.0
    %2338 = vmatpush2.msra.mxu0 0.0
    %2339 = vmatprep.subr.mxu0 0.0
    %2340 = vmatpush2.msra.mxu0 0.0
    %2341 = vmatprep.subr.mxu0 0.0
    %2342 = vmatpush2.msra.mxu0 0.0
    %2343 = vmatprep.subr.mxu0 0.0
    %2344 = vmatpush2.msra.mxu0 0.0
    %2345 = vmatprep.subr.mxu0 0.0
    %2346 = vmatpush2.msra.mxu0 0.0
    %2347 = vmatprep.subr.mxu0 0.0
    %2348 = vmatpush2.msra.mxu0 0.0
    %2349 = vmatprep.subr.mxu0 0.0
    %2350 = vmatpush2.msra.mxu0 0.0
    %2351 = vmatprep.subr.mxu0 0.0
    %2352 = vmatpush2.msra.mxu0 0.0
    %2353 = vmatprep.subr.mxu0 0.0
    %2354 = vmatpush2.msra.mxu0 0.0
    %2355 = vmatprep.subr.mxu0 0.0
    %2356 = vmatpush2.msra.mxu0 0.0
    %2357 = vmatprep.mubr.f32.mxu0 0.0
    %v2358 = vand.u32 %v1435, 4294901760
    %2359 = vmatmul.mubr.f32.gmra.mxu0 %v2358
    %v2360 = vpop.f32.mrf.mxu0
    %v2361 = vadd.f32 %v2288, %v2360
    %v2362 = vpop.f32.mrf.mxu0
    %2363 = vdwg.mxu0
    %v2364 = vld [vmem:[%s7] sm:$0x1]
    %v2365 = vmul.f32 %v33, %v1897
    %v2366 = vsub.f32 %v2365, %v2361
    %v2368 = vlaneseq
    %v2369 = vshrl.u32 %v2368, 7
    %v2370 = vsub.s32 0, %v2369
    %v2371 = vrot.slane %v2364, %v2370
    %v2373 = vmul.f32 %v2371, %v2366
    %v2374 = vld [vmem:[%s8] sm:$0x1]
    %v2376 = vlaneseq
    %v2377 = vshrl.u32 %v2376, 7
    %v2378 = vsub.s32 0, %v2377
    %v2379 = vrot.slane %v2374, %v2378
    %v2381 = vadd.f32 %v2373, %v2379
    %2382 = vst [vmem:[#allocation2] sm:$0xf] %v2381
    // Predicated region
    $region38: #{tpu_custom_call.1} parent=1 // pred_check
      _
    $region39: #{tpu_custom_call.1} parent=1 // pred_check_branch
      %2384 = sbr.rel (0) target = $region41
    $region40: #{tpu_custom_call.1} parent=1 // pred_region
      %s2386 = ssub.s32 64, 64
      %2387 = vsyncadd [#allocation3], %s2386
      %s2389 = sshll.u32 [#allocation2], 4
      %s2390 = int_to_ptr.vmem [resolvable:$true] %s2389
      %2392 = dma.vmem_to_hbm [thread:$0]  %s2390, 64, %s9, [#allocation3]
    $region41: #{tpu_custom_call.1} parent=1 // pred_fallthru
      _
    // Predicated region
    $region42: #{tpu_custom_call.1} parent=1 // pred_check
      _
    $region43: #{tpu_custom_call.1} parent=1 // pred_check_branch
      %2394 = sbr.rel (0) target = $region45
    $region44: #{tpu_custom_call.1} parent=1 // pred_region
      %2395 = dma.done [#allocation3], 64
    $region45: #{tpu_custom_call.1} parent=1 // pred_fallthru
      _
    %2396 = vsyncpa [#allocation3], 1

</llo_original>
